<compile_context>
chip_gen: v7x
topology: tpu7x:2x2x1
jax: 0.10.0
libtpu: 0.0.40
codegen_flags: <defaults>
</compile_context>

<pallas_src>
import jax
import jax.numpy as jnp
from jax.experimental import pallas as pl
from jax.experimental.pallas import tpu as pltpu

# Model dims (module hardcodes L=512, D=128, K=1)
L = 512
D = 128

NEG_LARGE = -1e30                       # finite "-inf": keeps online softmax NaN-free
DEFAULT_N_TILE = 4096                   # upper bound; clamped by the VMEM budget below
VMEM_DATA_BUDGET = 44 * 1024 * 1024     # data budget -> safe under v7x's 64 MiB VMEM


def _round_up(x, m):
    return (x + m - 1) // m * m


def _erf(x):
    # Abramowitz & Stegun 7.1.26 (|err| <= 1.5e-7); exp + polynomial only.
    a1, a2, a3, a4, a5 = 0.254829592, -0.284496736, 1.421413741, -1.453152027, 1.061405429
    pp = 0.3275911
    ax = jnp.abs(x)
    t = 1.0 / (1.0 + pp * ax)
    poly = ((((a5 * t + a4) * t + a3) * t + a2) * t + a1) * t
    y = 1.0 - poly * jnp.exp(-(ax * ax))
    return jnp.where(x < 0.0, -y, y)


def _gelu_exact(x):
    return 0.5 * x * (1.0 + _erf(x * 0.7071067811865476))


def dattention_kernel(n_ref,                                  # scalar prefetch: (1,) int32 = #valid rows
                      x_ref, w1_ref, b1_ref, wa1_ref, ba1_ref, wa2_ref, ba2_ref,
                      m_out, l_out, acc_out,                  # per-split online-softmax partials
                      m_sc, l_sc, acc_sc):                    # running state (VMEM scratch)
    c = pl.program_id(0)                # bag split (parallel -> TensorCores on v7x)
    i = pl.program_id(1)                # instance tile within the split (reduction axis)
    n_tiles = pl.num_programs(1)
    cdt = w1_ref.dtype                  # MXU operand dtype (bf16 by default)

    @pl.when(i == 0)
    def _init():
        m_sc[...] = jnp.full_like(m_sc, NEG_LARGE)
        l_sc[...] = jnp.zeros_like(l_sc)
        acc_sc[...] = jnp.zeros_like(acc_sc)

    # ---- feature = GELU(x @ W1 + b1); Dropout(eval) = identity ----------------------
    h = jnp.dot(x_ref[...], w1_ref[...], preferred_element_type=jnp.float32) + b1_ref[...]
    feat_c = _gelu_exact(h).astype(cdt)                        # (nt, L) — fused, no f32 copy kept

    # ---- attention scores, lane-dense (1, nt) on the MXU ----------------------------
    ah = jnp.tanh(jnp.dot(feat_c, wa1_ref[...], preferred_element_type=jnp.float32)
                  + ba1_ref[...]).astype(cdt)                  # (nt, D)
    s = jax.lax.dot_general(                                   # (1,D) x (nt,D)^T -> (1,nt)
        wa2_ref[...], ah,
        dimension_numbers=(((1,), (1,)), ((), ())),
        preferred_element_type=jnp.float32) + ba2_ref[0, 0]

    # mask padded rows (finite sentinel -> exp underflows to exactly 0, never NaN)
    nt = s.shape[-1]
    row = (c * n_tiles + i) * nt + jax.lax.broadcasted_iota(jnp.int32, (1, nt), 1)
    s = jnp.where(row < n_ref[0], s, NEG_LARGE)

    # ---- online softmax + weighted pooling (pool on the MXU) ------------------------
    m_prev = m_sc[...]                                          # (1, 1)
    m_new = jnp.maximum(m_prev, jnp.max(s, axis=-1, keepdims=True))
    alpha = jnp.exp(m_prev - m_new)
    p = jnp.exp(s - m_new)                                      # (1, nt) f32
    l_sc[...] = alpha * l_sc[...] + jnp.sum(p, axis=-1, keepdims=True)
    # p cast to cdt: <1% of MXU FLOPs; switch to f32 pool if huge-bag accuracy regresses.
    acc_sc[...] = alpha * acc_sc[...] + jnp.dot(p.astype(cdt), feat_c,
                                                preferred_element_type=jnp.float32)
    m_sc[...] = m_new

    # ---- emit this split's partial state ---------------------------------------------
    @pl.when(i == n_tiles - 1)
    def _finalize():
        m_out[0] = m_sc[...]
        l_out[0] = l_sc[...]
        acc_out[0] = acc_sc[...]


def prepare_params(params, compute_dtype=jnp.bfloat16):
    """One-time weight prep: cast MXU operands to compute dtype, pad d_in to 128."""
    d_in = params["w1"].shape[0]
    d_in_pad = _round_up(d_in, 128)
    w1 = params["w1"].astype(compute_dtype)
    if d_in_pad != d_in:
        w1 = jnp.pad(w1, ((0, d_in_pad - d_in), (0, 0)))
    return {
        "d_in": d_in, "d_in_pad": d_in_pad, "compute_dtype": compute_dtype,
        "w1": w1,
        "b1": params["b1"].astype(jnp.float32).reshape(1, L),
        "wa1": params["wa1"].astype(compute_dtype),
        "ba1": params["ba1"].astype(jnp.float32).reshape(1, D),
        "wa2": params["wa2"].astype(compute_dtype).reshape(1, D),
        "ba2": params["ba2"].astype(jnp.float32).reshape(1, 1),
        "wc": params["wc"].astype(jnp.float32),
        "bc": params["bc"].astype(jnp.float32).reshape(1, -1),
    }


def dattention_forward(x, prep, *, n_tile=DEFAULT_N_TILE, num_splits=2):
    """ABMIL cls_forward. Returns (features, logits, y_hat, y_prob)."""
    N, d_in = x.shape
    assert d_in == prep["d_in"]
    cdt = prep["compute_dtype"]
    d_in_pad = prep["d_in_pad"]
    bytes_x = jnp.dtype(cdt).itemsize
    align = 16 if bytes_x < 4 else 8                     # sublane packing of the streamed dtype

    # ---- tile size & VMEM sizing derived from d_in -----------------------------------
    per_row = (2 * d_in_pad * bytes_x                    # double-buffered x tile
               + L * 4 + L * bytes_x                     # f32 hidden + cdt features
               + D * 4 + D * bytes_x + 16)               # attention hidden + score row
    resident = (d_in_pad * L + L * D + D) * bytes_x + (2 * L + D + 8) * 4
    nt_cap = max(align, (VMEM_DATA_BUDGET - resident) // per_row)
    nt = max(align, (min(n_tile, nt_cap, _round_up(N, align)) // align) * align)

    tiles_total = -(-N // nt)
    num_splits = max(1, min(num_splits, tiles_total))
    tiles_per_split = -(-tiles_total // num_splits)
    n_pad = num_splits * tiles_per_split * nt

    # stream x in the compute dtype (halves N-scaling HBM traffic for bf16), lane-pad d_in
    x = x.astype(cdt)
    if n_pad != N or d_in_pad != d_in:
        x = jnp.pad(x, ((0, n_pad - N), (0, d_in_pad - d_in)))
    n_valid = jnp.full((1,), N, dtype=jnp.int32)

    const = lambda c, i, n: (0, 0)
    grid_spec = pltpu.PrefetchScalarGridSpec(
        num_scalar_prefetch=1,
        grid=(num_splits, tiles_per_split),
        in_specs=[
            pl.BlockSpec((nt, d_in_pad),
                         lambda c, i, n: (c * tiles_per_split + i, 0)),          # x: streamed
            pl.BlockSpec((d_in_pad, L), const, pipeline_mode=pl.Buffered(1)),    # w1  (resident)
            pl.BlockSpec((1, L), const, pipeline_mode=pl.Buffered(1)),           # b1
            pl.BlockSpec((L, D), const, pipeline_mode=pl.Buffered(1)),           # wa1
            pl.BlockSpec((1, D), const, pipeline_mode=pl.Buffered(1)),           # ba1
            pl.BlockSpec((1, D), const, pipeline_mode=pl.Buffered(1)),           # wa2 (row form)
            pl.BlockSpec(memory_space=pltpu.MemorySpace.SMEM),                   # ba2 (1,1) scalar
        ],
        out_specs=(
            pl.BlockSpec((1, 1, 1), lambda c, i, n: (c, 0, 0)),   # m partial per split
            pl.BlockSpec((1, 1, 1), lambda c, i, n: (c, 0, 0)),   # l partial per split
            pl.BlockSpec((1, 1, L), lambda c, i, n: (c, 0, 0)),   # pooled acc per split
        ),
        scratch_shapes=[
            pltpu.VMEM((1, 1), jnp.float32),                      # running max m
            pltpu.VMEM((1, 1), jnp.float32),                      # running denom l
            pltpu.VMEM((1, L), jnp.float32),                      # running pooled acc
        ],
    )

    vmem_limit = int(min(56 * 1024 * 1024,
                         max(resident + per_row * nt + (6 << 20), 24 * 1024 * 1024)))
    cost = pl.CostEstimate(
        flops=int(2 * n_pad * (d_in_pad * L + L * D + D + L)),
        transcendentals=int(n_pad * (L + D + 2)),
        bytes_accessed=int(n_pad * d_in_pad * bytes_x + resident + 3 * (L + 2) * 4),
    )

    m_part, l_part, acc_part = pl.pallas_call(
        dattention_kernel,
        out_shape=(
            jax.ShapeDtypeStruct((num_splits, 1, 1), jnp.float32),
            jax.ShapeDtypeStruct((num_splits, 1, 1), jnp.float32),
            jax.ShapeDtypeStruct((num_splits, 1, L), jnp.float32),
        ),
        grid_spec=grid_spec,
        compiler_params=pltpu.CompilerParams(
            dimension_semantics=("parallel", "arbitrary"),
            vmem_limit_bytes=vmem_limit,
        ),
        cost_estimate=cost,
    )(n_valid, x, prep["w1"], prep["b1"], prep["wa1"], prep["ba1"], prep["wa2"], prep["ba2"])

    # ---- tiny epilogue: merge split states, normalize, classifier head ----------------
    m_part = m_part[:, 0, 0]
    l_part = l_part[:, 0, 0]
    acc_part = acc_part[:, 0, :]
    m_glob = jnp.max(m_part)
    scale = jnp.exp(m_part - m_glob)                      # contribution of empty splits -> 0
    denom = jnp.sum(scale * l_part)
    pooled = (jnp.sum(scale[:, None] * acc_part, axis=0) / denom)[None, :]     # (1, L)
    logits = pooled @ prep["wc"] + prep["bc"]                                  # (1, C)
    y_hat = jnp.argmax(logits, axis=1)
    y_prob = jax.nn.softmax(logits, axis=-1)
    return pooled, logits, y_hat, y_prob


def init_params(key, d_in, n_classes):
    ks = jax.random.split(key, 8)
    scale = 0.02
    return {
        "w1":  scale * jax.random.normal(ks[0], (d_in, L), jnp.float32),
        "b1":  scale * jax.random.normal(ks[1], (1, L), jnp.float32),
        "wa1": scale * jax.random.normal(ks[2], (L, D), jnp.float32),
        "ba1": scale * jax.random.normal(ks[3], (1, D), jnp.float32),
        # Linear(D, 1) stored as a (1, D) row: scores = wa2 @ ah^T
        "wa2": scale * jax.random.normal(ks[4], (1, D), jnp.float32),
        "ba2": scale * jax.random.normal(ks[5], (1, 1), jnp.float32),
        "wc":  scale * jax.random.normal(ks[6], (L, n_classes), jnp.float32),
        "bc":  scale * jax.random.normal(ks[7], (1, n_classes), jnp.float32),
    }


def reference_forward(x, p):
    feat = jax.nn.gelu(x @ p["w1"] + p["b1"], approximate=False)
    ah = jnp.tanh(feat @ p["wa1"] + p["ba1"])
    a_raw = (ah @ p["wa2"].T + p["ba2"]).T          # (1, N)
    a = jax.nn.softmax(a_raw, axis=-1)
    pooled = a @ feat                               # (1, L)
    logits = pooled @ p["wc"] + p["bc"]
    return pooled, logits, jnp.argmax(logits, axis=1), jax.nn.softmax(logits, axis=-1)


if __name__ == "__main__":
    key = jax.random.PRNGKey(0)
    k_x1, k_x2, k_p = jax.random.split(key, 3)

    d_in, n_classes = 64, 4
    params = init_params(k_p, d_in, n_classes)
    x1 = jax.random.normal(k_x1, (16, d_in), jnp.float32)
    x2 = jax.random.normal(k_x2, (37, d_in), jnp.float32)
    rf1, rl1, ry1, rp1 = reference_forward(x1, params)
    rf2, rl2, ry2, rp2 = reference_forward(x2, params)

    # --- test 1: f32 compute path, single tile, exactness vs reference ----------------
    prep_f32 = prepare_params(params, compute_dtype=jnp.float32)
    f1, lg1, yh1, yp1 = dattention_forward(x1, prep_f32)
    jax.block_until_ready((f1, lg1, yh1, yp1))
    assert jnp.allclose(f1, rf1, atol=1e-3, rtol=1e-3)
    assert jnp.allclose(lg1, rl1, atol=1e-3, rtol=1e-3)
    assert jnp.allclose(yp1, rp1, atol=1e-3, rtol=1e-3)
    assert int(yh1[0]) == int(ry1[0])

    # --- test 2: default bf16 path, multi-tile streaming, 2-way split, padded tail ----
    prep_bf16 = prepare_params(params)                       # bf16 MXU operands + bf16 x stream
    f2, lg2, yh2, yp2 = dattention_forward(x2, prep_bf16, n_tile=16, num_splits=2)
    jax.block_until_ready((f2, lg2, yh2, yp2))
    assert jnp.allclose(f2, rf2, atol=3e-2, rtol=3e-2)
    assert jnp.allclose(lg2, rl2, atol=3e-2, rtol=3e-2)
    assert jnp.allclose(yp2, rp2, atol=3e-2, rtol=3e-2)

    # --- test 3: f32, multi-tile + split with partially-valid last tile ---------------
    f3, lg3, yh3, yp3 = dattention_forward(x2, prep_f32, n_tile=16, num_splits=2)
    jax.block_until_ready((f3, lg3, yh3, yp3))
    assert jnp.allclose(f3, rf2, atol=1e-3, rtol=1e-3)
    assert jnp.allclose(lg3, rl2, atol=1e-3, rtol=1e-3)
    assert jnp.allclose(yp3, rp2, atol=1e-3, rtol=1e-3)
    assert int(yh3[0]) == int(ry2[0])

    print("KERNEL_OK")
</pallas_src>

<mosaic_0001>
module attributes {stable_mosaic.version = 11 : i64} {
  func.func @dattention_kernel(%arg0: i32, %arg1: i32, %arg2: memref<1xi32, #tpu.memory_space<smem>>, %arg3: memref<16x128xf32, #tpu.memory_space<vmem>>, %arg4: memref<128x512xf32, #tpu.memory_space<vmem>>, %arg5: memref<1x512xf32, #tpu.memory_space<vmem>>, %arg6: memref<512x128xf32, #tpu.memory_space<vmem>>, %arg7: memref<1x128xf32, #tpu.memory_space<vmem>>, %arg8: memref<1x128xf32, #tpu.memory_space<vmem>>, %arg9: memref<1x1xf32, #tpu.memory_space<smem>>, %arg10: memref<1x1x1xf32, #tpu.memory_space<vmem>>, %arg11: memref<1x1x1xf32, #tpu.memory_space<vmem>>, %arg12: memref<1x1x512xf32, #tpu.memory_space<vmem>>, %arg13: memref<1x1xf32, #tpu.memory_space<vmem>>, %arg14: memref<1x1xf32, #tpu.memory_space<vmem>>, %arg15: memref<1x512xf32, #tpu.memory_space<vmem>>) attributes {dimension_semantics = [#tpu.dimension_semantics<parallel>, #tpu.dimension_semantics<arbitrary>], iteration_bounds = array<i64: 1, 1>, scalar_prefetch = 1 : i64, scratch_operands = 3 : i64, tpu.core_type = #tpu.core_type<tc>, window_params = [{transform_indices = @transform_0, window_bounds = array<i64: 16, 128>}, {pipeline_mode = #tpu.pipeline_mode<synchronous>, transform_indices = @transform_1, window_bounds = array<i64: 128, 512>}, {pipeline_mode = #tpu.pipeline_mode<synchronous>, transform_indices = @transform_2, window_bounds = array<i64: 1, 512>}, {pipeline_mode = #tpu.pipeline_mode<synchronous>, transform_indices = @transform_3, window_bounds = array<i64: 512, 128>}, {pipeline_mode = #tpu.pipeline_mode<synchronous>, transform_indices = @transform_4, window_bounds = array<i64: 1, 128>}, {pipeline_mode = #tpu.pipeline_mode<synchronous>, transform_indices = @transform_5, window_bounds = array<i64: 1, 128>}, {transform_indices = @transform_6, window_bounds = array<i64: 1, 1>}, {transform_indices = @transform_7, window_bounds = array<i64: 1, 1, 1>}, {transform_indices = @transform_8, window_bounds = array<i64: 1, 1, 1>}, {transform_indices = @transform_9, window_bounds = array<i64: 1, 1, 512>}]} {
    %c0_i32 = arith.constant 0 : i32
    %0 = arith.cmpi eq, %arg1, %c0_i32 : i32
    %1 = arith.extui %0 : i1 to i32
    %c0_i32_0 = arith.constant 0 : i32
    %2 = arith.cmpi ne, %1, %c0_i32_0 : i32
    scf.if %2 {
      %cst_50 = arith.constant -1.000000e+30 : f32
      %96 = vector.broadcast %cst_50 : f32 to vector<1x1xf32>
      %c0_51 = arith.constant 0 : index
      %c0_52 = arith.constant 0 : index
      %97 = vector.load %arg13[%c0_51, %c0_52] : memref<1x1xf32, #tpu.memory_space<vmem>>, vector<1x1xf32>
      tpu.vector_store %arg13[%c0_51, %c0_52], %96 {strides = array<i32>} : memref<1x1xf32, #tpu.memory_space<vmem>>, vector<1x1xf32>,
      %cst_53 = arith.constant 0.000000e+00 : f32
      %98 = vector.broadcast %cst_53 : f32 to vector<1x1xf32>
      %c0_54 = arith.constant 0 : index
      %c0_55 = arith.constant 0 : index
      %99 = vector.load %arg14[%c0_54, %c0_55] : memref<1x1xf32, #tpu.memory_space<vmem>>, vector<1x1xf32>
      tpu.vector_store %arg14[%c0_54, %c0_55], %98 {strides = array<i32>} : memref<1x1xf32, #tpu.memory_space<vmem>>, vector<1x1xf32>,
      %cst_56 = arith.constant 0.000000e+00 : f32
      %100 = vector.broadcast %cst_56 : f32 to vector<1x512xf32>
      %c0_57 = arith.constant 0 : index
      %c0_58 = arith.constant 0 : index
      %101 = vector.load %arg15[%c0_57, %c0_58] : memref<1x512xf32, #tpu.memory_space<vmem>>, vector<1x512xf32>
      tpu.vector_store %arg15[%c0_57, %c0_58], %100 {strides = array<i32>} : memref<1x512xf32, #tpu.memory_space<vmem>>, vector<1x512xf32>,
    } else {
    }
    %c0 = arith.constant 0 : index
    %c0_1 = arith.constant 0 : index
    %3 = vector.load %arg3[%c0, %c0_1] : memref<16x128xf32, #tpu.memory_space<vmem>>, vector<16x128xf32>
    %c0_2 = arith.constant 0 : index
    %c0_3 = arith.constant 0 : index
    %4 = vector.load %arg4[%c0_2, %c0_3] : memref<128x512xf32, #tpu.memory_space<vmem>>, vector<128x512xf32>
    %cst = arith.constant dense<0.000000e+00> : vector<16x512xf32>
    %5 = tpu.matmul %3, %4, %cst {dimension_numbers = #tpu.dot_dimension_numbers<[1], [0], [0], [1], [0, 0, 1, 1], [], []>} : vector<16x128xf32>, vector<128x512xf32>, vector<16x512xf32> -> vector<16x512xf32>
    %c0_4 = arith.constant 0 : index
    %c0_5 = arith.constant 0 : index
    %6 = vector.load %arg5[%c0_4, %c0_5] : memref<1x512xf32, #tpu.memory_space<vmem>>, vector<1x512xf32>
    %7 = vector.broadcast %6 : vector<1x512xf32> to vector<16x512xf32>
    %8 = arith.addf %5, %7 : vector<16x512xf32>
    %cst_6 = arith.constant 5.000000e-01 : f32
    %9 = vector.broadcast %cst_6 : f32 to vector<16x512xf32>
    %10 = arith.mulf %9, %8 : vector<16x512xf32>
    %cst_7 = arith.constant 0.707106769 : f32
    %11 = vector.broadcast %cst_7 : f32 to vector<16x512xf32>
    %12 = arith.mulf %8, %11 : vector<16x512xf32>
    %13 = math.absf %12 : vector<16x512xf32>
    %cst_8 = arith.constant 0.327591091 : f32
    %14 = vector.broadcast %cst_8 : f32 to vector<16x512xf32>
    %15 = arith.mulf %14, %13 : vector<16x512xf32>
    %cst_9 = arith.constant 1.000000e+00 : f32
    %16 = vector.broadcast %cst_9 : f32 to vector<16x512xf32>
    %17 = arith.addf %16, %15 : vector<16x512xf32>
    %cst_10 = arith.constant 1.000000e+00 : f32
    %18 = vector.broadcast %cst_10 : f32 to vector<16x512xf32>
    %19 = arith.divf %18, %17 : vector<16x512xf32>
    %cst_11 = arith.constant 1.06140542 : f32
    %20 = vector.broadcast %cst_11 : f32 to vector<16x512xf32>
    %21 = arith.mulf %20, %19 : vector<16x512xf32>
    %cst_12 = arith.constant -1.45315206 : f32
    %22 = vector.broadcast %cst_12 : f32 to vector<16x512xf32>
    %23 = arith.addf %21, %22 : vector<16x512xf32>
    %24 = arith.mulf %23, %19 : vector<16x512xf32>
    %cst_13 = arith.constant 1.42141378 : f32
    %25 = vector.broadcast %cst_13 : f32 to vector<16x512xf32>
    %26 = arith.addf %24, %25 : vector<16x512xf32>
    %27 = arith.mulf %26, %19 : vector<16x512xf32>
    %cst_14 = arith.constant -0.284496725 : f32
    %28 = vector.broadcast %cst_14 : f32 to vector<16x512xf32>
    %29 = arith.addf %27, %28 : vector<16x512xf32>
    %30 = arith.mulf %29, %19 : vector<16x512xf32>
    %cst_15 = arith.constant 0.254829586 : f32
    %31 = vector.broadcast %cst_15 : f32 to vector<16x512xf32>
    %32 = arith.addf %30, %31 : vector<16x512xf32>
    %33 = arith.mulf %32, %19 : vector<16x512xf32>
    %34 = arith.mulf %13, %13 : vector<16x512xf32>
    %cst_16 = arith.constant 0.000000e+00 : f32
    %35 = vector.broadcast %cst_16 : f32 to vector<16x512xf32>
    %36 = arith.subf %35, %34 : vector<16x512xf32>
    %37 = math.exp %36 : vector<16x512xf32>
    %38 = arith.mulf %33, %37 : vector<16x512xf32>
    %cst_17 = arith.constant 1.000000e+00 : f32
    %39 = vector.broadcast %cst_17 : f32 to vector<16x512xf32>
    %40 = arith.subf %39, %38 : vector<16x512xf32>
    %cst_18 = arith.constant 0.000000e+00 : f32
    %41 = vector.broadcast %cst_18 : f32 to vector<16x512xf32>
    %42 = arith.cmpf olt, %12, %41 : vector<16x512xf32>
    %cst_19 = arith.constant 0.000000e+00 : f32
    %43 = vector.broadcast %cst_19 : f32 to vector<16x512xf32>
    %44 = arith.subf %43, %40 : vector<16x512xf32>
    %45 = arith.select %42, %44, %40 : vector<16x512xi1>, vector<16x512xf32>
    %cst_20 = arith.constant 1.000000e+00 : f32
    %46 = vector.broadcast %cst_20 : f32 to vector<16x512xf32>
    %47 = arith.addf %46, %45 : vector<16x512xf32>
    %48 = arith.mulf %10, %47 : vector<16x512xf32>
    %c0_21 = arith.constant 0 : index
    %c0_22 = arith.constant 0 : index
    %49 = vector.load %arg6[%c0_21, %c0_22] : memref<512x128xf32, #tpu.memory_space<vmem>>, vector<512x128xf32>
    %cst_23 = arith.constant dense<0.000000e+00> : vector<16x128xf32>
    %50 = tpu.matmul %48, %49, %cst_23 {dimension_numbers = #tpu.dot_dimension_numbers<[1], [0], [0], [1], [0, 0, 1, 1], [], []>} : vector<16x512xf32>, vector<512x128xf32>, vector<16x128xf32> -> vector<16x128xf32>
    %c0_24 = arith.constant 0 : index
    %c0_25 = arith.constant 0 : index
    %51 = vector.load %arg7[%c0_24, %c0_25] : memref<1x128xf32, #tpu.memory_space<vmem>>, vector<1x128xf32>
    %52 = vector.broadcast %51 : vector<1x128xf32> to vector<16x128xf32>
    %53 = arith.addf %50, %52 : vector<16x128xf32>
    %54 = math.tanh %53 : vector<16x128xf32>
    %c0_26 = arith.constant 0 : index
    %c0_27 = arith.constant 0 : index
    %55 = vector.load %arg8[%c0_26, %c0_27] : memref<1x128xf32, #tpu.memory_space<vmem>>, vector<1x128xf32>
    %cst_28 = arith.constant dense<0.000000e+00> : vector<1x16xf32>
    %56 = tpu.matmul %55, %54, %cst_28 {dimension_numbers = #tpu.dot_dimension_numbers<[1], [1], [0], [0], [0, 0, 1, 0], [], []>} : vector<1x128xf32>, vector<16x128xf32>, vector<1x16xf32> -> vector<1x16xf32>
    %c0_29 = arith.constant 0 : index
    %c0_30 = arith.constant 0 : index
    %57 = memref.load %arg9[%c0_29, %c0_30] : memref<1x1xf32, #tpu.memory_space<smem>>
    %58 = vector.broadcast %57 : f32 to vector<1x16xf32>
    %59 = arith.addf %56, %58 : vector<1x16xf32>
    %c1_i32 = arith.constant 1 : i32
    %60 = arith.muli %arg0, %c1_i32 : i32
    %61 = arith.addi %60, %arg1 : i32
    %c16_i32 = arith.constant 16 : i32
    %62 = arith.muli %61, %c16_i32 : i32
    %63 = tpu.iota {dimensions = array<i32: 1>} : vector<1x16xi32>
    %64 = vector.broadcast %62 : i32 to vector<1x16xi32>
    %65 = arith.addi %64, %63 : vector<1x16xi32>
    %c0_31 = arith.constant 0 : index
    %66 = memref.load %arg2[%c0_31] : memref<1xi32, #tpu.memory_space<smem>>
    %67 = vector.broadcast %66 : i32 to vector<1x16xi32>
    %68 = arith.cmpi slt, %65, %67 : vector<1x16xi32>
    %cst_32 = arith.constant -1.000000e+30 : f32
    %69 = vector.broadcast %cst_32 : f32 to vector<1x16xf32>
    %70 = arith.select %68, %59, %69 : vector<1x16xi1>, vector<1x16xf32>
    %c0_33 = arith.constant 0 : index
    %c0_34 = arith.constant 0 : index
    %71 = vector.load %arg13[%c0_33, %c0_34] : memref<1x1xf32, #tpu.memory_space<vmem>>, vector<1x1xf32>
    %cst_35 = arith.constant dense<0xFF800000> : vector<1xf32>
    %72 = vector.multi_reduction <maximumf>, %70, %cst_35 [1] : vector<1x16xf32> to vector<1xf32>
    %73 = vector.shape_cast %72 : vector<1xf32> to vector<1x1xf32>
    %74 = arith.maximumf %71, %73 : vector<1x1xf32>
    %75 = arith.subf %71, %74 : vector<1x1xf32>
    %76 = math.exp %75 : vector<1x1xf32>
    %77 = vector.broadcast %74 : vector<1x1xf32> to vector<1x16xf32>
    %78 = arith.subf %70, %77 : vector<1x16xf32>
    %79 = math.exp %78 : vector<1x16xf32>
    %c0_36 = arith.constant 0 : index
    %c0_37 = arith.constant 0 : index
    %80 = vector.load %arg14[%c0_36, %c0_37] : memref<1x1xf32, #tpu.memory_space<vmem>>, vector<1x1xf32>
    %81 = arith.mulf %76, %80 : vector<1x1xf32>
    %cst_38 = arith.constant dense<0.000000e+00> : vector<1xf32>
    %82 = vector.multi_reduction <add>, %79, %cst_38 [1] : vector<1x16xf32> to vector<1xf32>
    %83 = vector.shape_cast %82 : vector<1xf32> to vector<1x1xf32>
    %84 = arith.addf %81, %83 : vector<1x1xf32>
    %c0_39 = arith.constant 0 : index
    %c0_40 = arith.constant 0 : index
    %85 = vector.load %arg14[%c0_39, %c0_40] : memref<1x1xf32, #tpu.memory_space<vmem>>, vector<1x1xf32>
    tpu.vector_store %arg14[%c0_39, %c0_40], %84 {strides = array<i32>} : memref<1x1xf32, #tpu.memory_space<vmem>>, vector<1x1xf32>,
    %c0_41 = arith.constant 0 : index
    %c0_42 = arith.constant 0 : index
    %86 = vector.load %arg15[%c0_41, %c0_42] : memref<1x512xf32, #tpu.memory_space<vmem>>, vector<1x512xf32>
    %87 = vector.broadcast %76 : vector<1x1xf32> to vector<1x512xf32>
    %88 = arith.mulf %87, %86 : vector<1x512xf32>
    %cst_43 = arith.constant dense<0.000000e+00> : vector<1x512xf32>
    %89 = tpu.matmul %79, %48, %cst_43 {dimension_numbers = #tpu.dot_dimension_numbers<[1], [0], [0], [1], [0, 0, 1, 1], [], []>} : vector<1x16xf32>, vector<16x512xf32>, vector<1x512xf32> -> vector<1x512xf32>
    %90 = arith.addf %88, %89 : vector<1x512xf32>
    %c0_44 = arith.constant 0 : index
    %c0_45 = arith.constant 0 : index
    %91 = vector.load %arg15[%c0_44, %c0_45] : memref<1x512xf32, #tpu.memory_space<vmem>>, vector<1x512xf32>
    tpu.vector_store %arg15[%c0_44, %c0_45], %90 {strides = array<i32>} : memref<1x512xf32, #tpu.memory_space<vmem>>, vector<1x512xf32>,
    %c0_46 = arith.constant 0 : index
    %c0_47 = arith.constant 0 : index
    %92 = vector.load %arg13[%c0_46, %c0_47] : memref<1x1xf32, #tpu.memory_space<vmem>>, vector<1x1xf32>
    tpu.vector_store %arg13[%c0_46, %c0_47], %74 {strides = array<i32>} : memref<1x1xf32, #tpu.memory_space<vmem>>, vector<1x1xf32>,
    %c0_i32_48 = arith.constant 0 : i32
    %93 = arith.cmpi eq, %arg1, %c0_i32_48 : i32
    %94 = arith.extui %93 : i1 to i32
    %c0_i32_49 = arith.constant 0 : i32
    %95 = arith.cmpi ne, %94, %c0_i32_49 : i32
    scf.if %95 {
      %c0_50 = arith.constant 0 : index
      %c0_51 = arith.constant 0 : index
      %96 = vector.load %arg13[%c0_50, %c0_51] : memref<1x1xf32, #tpu.memory_space<vmem>>, vector<1x1xf32>
      %c0_52 = arith.constant 0 : index
      %c0_53 = arith.constant 0 : index
      %c0_54 = arith.constant 0 : index
      %97 = vector.load %arg10[%c0_52, %c0_53, %c0_54] : memref<1x1x1xf32, #tpu.memory_space<vmem>>, vector<1x1x1xf32>
      %98 = vector.shape_cast %97 : vector<1x1x1xf32> to vector<1x1xf32>
      %99 = vector.shape_cast %96 : vector<1x1xf32> to vector<1x1x1xf32>
      tpu.vector_store %arg10[%c0_52, %c0_53, %c0_54], %99 {strides = array<i32>} : memref<1x1x1xf32, #tpu.memory_space<vmem>>, vector<1x1x1xf32>,
      %c0_55 = arith.constant 0 : index
      %c0_56 = arith.constant 0 : index
      %100 = vector.load %arg14[%c0_55, %c0_56] : memref<1x1xf32, #tpu.memory_space<vmem>>, vector<1x1xf32>
      %c0_57 = arith.constant 0 : index
      %c0_58 = arith.constant 0 : index
      %c0_59 = arith.constant 0 : index
      %101 = vector.load %arg11[%c0_57, %c0_58, %c0_59] : memref<1x1x1xf32, #tpu.memory_space<vmem>>, vector<1x1x1xf32>
      %102 = vector.shape_cast %101 : vector<1x1x1xf32> to vector<1x1xf32>
      %103 = vector.shape_cast %100 : vector<1x1xf32> to vector<1x1x1xf32>
      tpu.vector_store %arg11[%c0_57, %c0_58, %c0_59], %103 {strides = array<i32>} : memref<1x1x1xf32, #tpu.memory_space<vmem>>, vector<1x1x1xf32>,
      %c0_60 = arith.constant 0 : index
      %c0_61 = arith.constant 0 : index
      %104 = vector.load %arg15[%c0_60, %c0_61] : memref<1x512xf32, #tpu.memory_space<vmem>>, vector<1x512xf32>
      %c0_62 = arith.constant 0 : index
      %c0_63 = arith.constant 0 : index
      %c0_64 = arith.constant 0 : index
      %105 = vector.load %arg12[%c0_62, %c0_63, %c0_64] : memref<1x1x512xf32, #tpu.memory_space<vmem>>, vector<1x1x512xf32>
      %106 = vector.shape_cast %105 : vector<1x1x512xf32> to vector<1x512xf32>
      %107 = vector.shape_cast %104 : vector<1x512xf32> to vector<1x1x512xf32>
      tpu.vector_store %arg12[%c0_62, %c0_63, %c0_64], %107 {strides = array<i32>} : memref<1x1x512xf32, #tpu.memory_space<vmem>>, vector<1x1x512xf32>,
    } else {
    }
    return
  }
  func.func @transform_0(%arg0: i32, %arg1: i32, %arg2: memref<1xi32, #tpu.memory_space<smem>>) -> (i32, i32) {
    %c1_i32 = arith.constant 1 : i32
    %0 = arith.muli %arg0, %c1_i32 : i32
    %1 = arith.addi %0, %arg1 : i32
    %c0_i32 = arith.constant 0 : i32
    %c0_i32_0 = arith.constant 0 : i32
    return %1, %c0_i32 : i32, i32
  }
  func.func @transform_1(%arg0: i32, %arg1: i32, %arg2: memref<1xi32, #tpu.memory_space<smem>>) -> (i32, i32) {
    %c0_i32 = arith.constant 0 : i32
    %c0_i32_0 = arith.constant 0 : i32
    %c0_i32_1 = arith.constant 0 : i32
    return %c0_i32, %c0_i32_0 : i32, i32
  }
  func.func @transform_2(%arg0: i32, %arg1: i32, %arg2: memref<1xi32, #tpu.memory_space<smem>>) -> (i32, i32) {
    %c0_i32 = arith.constant 0 : i32
    %c0_i32_0 = arith.constant 0 : i32
    %c0_i32_1 = arith.constant 0 : i32
    return %c0_i32, %c0_i32_0 : i32, i32
  }
  func.func @transform_3(%arg0: i32, %arg1: i32, %arg2: memref<1xi32, #tpu.memory_space<smem>>) -> (i32, i32) {
    %c0_i32 = arith.constant 0 : i32
    %c0_i32_0 = arith.constant 0 : i32
    %c0_i32_1 = arith.constant 0 : i32
    return %c0_i32, %c0_i32_0 : i32, i32
  }
  func.func @transform_4(%arg0: i32, %arg1: i32, %arg2: memref<1xi32, #tpu.memory_space<smem>>) -> (i32, i32) {
    %c0_i32 = arith.constant 0 : i32
    %c0_i32_0 = arith.constant 0 : i32
    %c0_i32_1 = arith.constant 0 : i32
    return %c0_i32, %c0_i32_0 : i32, i32
  }
  func.func @transform_5(%arg0: i32, %arg1: i32, %arg2: memref<1xi32, #tpu.memory_space<smem>>) -> (i32, i32) {
    %c0_i32 = arith.constant 0 : i32
    %c0_i32_0 = arith.constant 0 : i32
    %c0_i32_1 = arith.constant 0 : i32
    return %c0_i32, %c0_i32_0 : i32, i32
  }
  func.func @transform_6(%arg0: i32, %arg1: i32, %arg2: memref<1xi32, #tpu.memory_space<smem>>) -> (i32, i32) {
    %c0_i32 = arith.constant 0 : i32
    %c0_i32_0 = arith.constant 0 : i32
    %c0_i32_1 = arith.constant 0 : i32
    return %c0_i32, %c0_i32_0 : i32, i32
  }
  func.func @transform_7(%arg0: i32, %arg1: i32, %arg2: memref<1xi32, #tpu.memory_space<smem>>) -> (i32, i32, i32) {
    %c0_i32 = arith.constant 0 : i32
    %c0_i32_0 = arith.constant 0 : i32
    %c0_i32_1 = arith.constant 0 : i32
    return %arg0, %c0_i32, %c0_i32_0 : i32, i32, i32
  }
  func.func @transform_8(%arg0: i32, %arg1: i32, %arg2: memref<1xi32, #tpu.memory_space<smem>>) -> (i32, i32, i32) {
    %c0_i32 = arith.constant 0 : i32
    %c0_i32_0 = arith.constant 0 : i32
    %c0_i32_1 = arith.constant 0 : i32
    return %arg0, %c0_i32, %c0_i32_0 : i32, i32, i32
  }
  func.func @transform_9(%arg0: i32, %arg1: i32, %arg2: memref<1xi32, #tpu.memory_space<smem>>) -> (i32, i32, i32) {
    %c0_i32 = arith.constant 0 : i32
    %c0_i32_0 = arith.constant 0 : i32
    %c0_i32_1 = arith.constant 0 : i32
    return %arg0, %c0_i32, %c0_i32_0 : i32, i32, i32
  }
}

</mosaic_0001>

<llo_original>
// kernel: tpu_custom_call.1
$region0: #{tpu_custom_call.1}
  #allocation0 [shape = 'u32[]', space=smem, size = 0x4, offset = 0x4, fixed_abs, tag = 'smem constant byte address 0x4 - core index']
  #allocation1 [shape = 'u32[144,128]{1,0:T(1,128)}', space=vmem, size = 0x12000, scoped, tag = 'internal scratch']
  #allocation2 [shape = 'f32[1,1]{1,0:T(1,128)}', space=vmem, size = 0x200, scoped, tag = 'scratch operand']
  #allocation3 [shape = 'f32[1,1]{1,0:T(1,128)}', space=vmem, size = 0x200, scoped, tag = 'scratch operand']
  #allocation4 [shape = 'f32[1,512]{1,0:T(1,128)}', space=vmem, size = 0x800, scoped, tag = 'scratch operand']
  #allocation5 [shape = 's32[1]{0}', space=sflag, size = 0x4, scoped, tag = 'scoped memory for tpu_custom_call.1']
  #allocation6 [shape = 's32[1]{0:T(128)S(6)}', space=smem, size = 0x200, scoped, tag = 'prefetched SMEM operand 0']
  #allocation7 [shape = 'f32[1,1]{1,0:T(1,128)S(6)}', space=smem, size = 0x200, scoped, tag = 'scoped memory for tpu_custom_call.1']
  %s0 = inlined_call_operand.<no memory space> [shape: s32[1], index: 0, kind: input, shape index: {}]
  %s1 = inlined_call_operand.hbm [shape: f32[16,128], index: 1, kind: input, shape index: {}]
  %s2 = inlined_call_operand.hbm [shape: f32[128,512], index: 2, kind: input, shape index: {}]
  %s3 = inlined_call_operand.vmem [shape: f32[1,512], index: 3, kind: input, shape index: {}]
  %s4 = inlined_call_operand.hbm [shape: f32[512,128], index: 4, kind: input, shape index: {}]
  %s5 = inlined_call_operand.vmem [shape: f32[1,128], index: 5, kind: input, shape index: {}]
  %s6 = inlined_call_operand.vmem [shape: f32[1,128], index: 6, kind: input, shape index: {}]
  %s7 = inlined_call_operand.<no memory space> [shape: f32[1,1], index: 7, kind: input, shape index: {}]
  %s8 = inlined_call_operand.hbm [shape: f32[1,1,1], index: 8, kind: output, shape index: {0}]
  %s9 = inlined_call_operand.hbm [shape: f32[1,1,1], index: 9, kind: output, shape index: {1}]
  %s10 = inlined_call_operand.hbm [shape: f32[1,1,512], index: 10, kind: output, shape index: {2}]
  %11 = xla_tuple %s8, %s9, %s10
  %s12 = sld [smem:[#allocation0]]
  $region74: #{tpu_custom_call.1} parent=0
    _
  %s14 = ssub.s32 1, %s12
  %s15 = scalar_select 0, %s14, %s12
  %16 = sst [smem:[#allocation6]] %s0
  %17 = sst [smem:[#allocation7]] %s7
  $region1: #{tpu_custom_call.1} parent=0
    #allocation8 [shape = 'u8[8192]{0}', space=vmem, size = 0x2000, scoped, tag = 'input window, operand 1, single buffered']
    #allocation9 [shape = 's32[1]{0}', space=sflag, size = 0x4, scoped, tag = 'scoped memory for tpu_custom_call.1']
    #allocation10 [shape = 's32[1]{0}', space=sflag, size = 0x4, scoped, tag = 'scoped memory for tpu_custom_call.1']
    #allocation11 [shape = 'u8[262144]{0}', space=vmem, size = 0x40000, scoped, tag = 'input window, operand 2, single buffered']
    #allocation12 [shape = 's32[1]{0}', space=sflag, size = 0x4, scoped, tag = 'scoped memory for tpu_custom_call.1']
    #allocation13 [shape = 'u8[262144]{0}', space=vmem, size = 0x40000, scoped, tag = 'input window, operand 4, single buffered']
    #allocation14 [shape = 'u8[512]{0}', space=vmem, size = 0x400, scoped, tag = 'output window, operand 0, single buffered']
    #allocation15 [shape = 'u8[512]{0}', space=vmem, size = 0x400, scoped, tag = 'output window, operand 1, single buffered']
    #allocation16 [shape = 's32[1]{0}', space=sflag, size = 0x4, scoped, tag = 'scoped memory for tpu_custom_call.1']
    #allocation17 [shape = 'u8[2048]{0}', space=vmem, size = 0x800, scoped, tag = 'output window, operand 2, single buffered']
    %18 = vsyncpa [#allocation9], 0
    %19 = vsyncpa [#allocation12], 0
    %20 = vsyncpa [#allocation10], 0
    %21 = vsyncpa [#allocation16], 0
    // Predicated region
    $region2: #{tpu_custom_call.1} parent=1 // pred_check
      _
    $region3: #{tpu_custom_call.1} parent=1 // pred_check_branch
      %23 = sbr.rel (0) target = $region5
    $region4: #{tpu_custom_call.1} parent=1 // pred_region
      %s24 = sadd.s32 0, 0
      %s25 = smul.u32 2, %s24
      %s27 = ssub.s32 256, 256
      %28 = vsyncadd [#allocation9], %s27
      %s29 = smul.addr %s25, 128
      %s30 = scalar_lea.hbm %s1, %s29
      %s31 = sshll.u32 [#allocation8], 4
      %s32 = int_to_ptr.vmem [resolvable:$true] %s31
      %37 = dma.hbm_to_vmem [thread:$0]  %s30, 256, %s32, [#allocation9], 128, 128, 8
    $region5: #{tpu_custom_call.1} parent=1 // pred_fallthru
      _
    // Predicated region
    $region6: #{tpu_custom_call.1} parent=1 // pred_check
      _
    $region7: #{tpu_custom_call.1} parent=1 // pred_check_branch
      %39 = sbr.rel (0) target = $region9
    $region8: #{tpu_custom_call.1} parent=1 // pred_region
      %s41 = ssub.s32 8192, 8192
      %42 = vsyncadd [#allocation12], %s41
      %s43 = sshll.u32 [#allocation11], 4
      %s44 = int_to_ptr.vmem [resolvable:$true] %s43
      %49 = dma.hbm_to_vmem [thread:$0]  %s2, 8192, %s44, [#allocation12], 512, 512, 32
    $region9: #{tpu_custom_call.1} parent=1 // pred_fallthru
      _
    // Predicated region
    $region10: #{tpu_custom_call.1} parent=1 // pred_check
      _
    $region11: #{tpu_custom_call.1} parent=1 // pred_check_branch
      %51 = sbr.rel (0) target = $region13
    $region12: #{tpu_custom_call.1} parent=1 // pred_region
      _
    $region13: #{tpu_custom_call.1} parent=1 // pred_fallthru
      _
    // Predicated region
    $region14: #{tpu_custom_call.1} parent=1 // pred_check
      _
    $region15: #{tpu_custom_call.1} parent=1 // pred_check_branch
      %53 = sbr.rel (0) target = $region17
    $region16: #{tpu_custom_call.1} parent=1 // pred_region
      %s55 = ssub.s32 8192, 8192
      %56 = vsyncadd [#allocation12], %s55
      %s57 = sshll.u32 [#allocation13], 4
      %s58 = int_to_ptr.vmem [resolvable:$true] %s57
      %63 = dma.hbm_to_vmem [thread:$0]  %s4, 8192, %s58, [#allocation12], 128, 128, 8
    $region17: #{tpu_custom_call.1} parent=1 // pred_fallthru
      _
    // Predicated region
    $region18: #{tpu_custom_call.1} parent=1 // pred_check
      _
    $region19: #{tpu_custom_call.1} parent=1 // pred_check_branch
      %65 = sbr.rel (0) target = $region21
    $region20: #{tpu_custom_call.1} parent=1 // pred_region
      _
    $region21: #{tpu_custom_call.1} parent=1 // pred_fallthru
      _
    // Predicated region
    $region22: #{tpu_custom_call.1} parent=1 // pred_check
      _
    $region23: #{tpu_custom_call.1} parent=1 // pred_check_branch
      %67 = sbr.rel (0) target = $region25
    $region24: #{tpu_custom_call.1} parent=1 // pred_region
      _
    $region25: #{tpu_custom_call.1} parent=1 // pred_fallthru
      _
    // Predicated region
    $region26: #{tpu_custom_call.1} parent=1 // pred_check
      _
    $region27: #{tpu_custom_call.1} parent=1 // pred_check_branch
      %69 = sbr.rel (0) target = $region29
    $region28: #{tpu_custom_call.1} parent=1 // pred_region
      _
    $region29: #{tpu_custom_call.1} parent=1 // pred_fallthru
      _
    // Predicated region
    $region30: #{tpu_custom_call.1} parent=1 // pred_check
      _
    $region31: #{tpu_custom_call.1} parent=1 // pred_check_branch
      %71 = sbr.rel (0) target = $region33
    $region32: #{tpu_custom_call.1} parent=1 // pred_region
      %72 = dma.done [#allocation9], 256
    $region33: #{tpu_custom_call.1} parent=1 // pred_fallthru
      _
    // Predicated region
    $region34: #{tpu_custom_call.1} parent=1 // pred_check
      _
    $region35: #{tpu_custom_call.1} parent=1 // pred_check_branch
      %74 = sbr.rel (0) target = $region37
    $region36: #{tpu_custom_call.1} parent=1 // pred_region
      %75 = dma.done [#allocation12], 8192
    $region37: #{tpu_custom_call.1} parent=1 // pred_fallthru
      _
    // Predicated region
    $region38: #{tpu_custom_call.1} parent=1 // pred_check
      _
    $region39: #{tpu_custom_call.1} parent=1 // pred_check_branch
      %77 = sbr.rel (0) target = $region41
    $region40: #{tpu_custom_call.1} parent=1 // pred_region
      %78 = dma.done [#allocation12], 8192
    $region41: #{tpu_custom_call.1} parent=1 // pred_fallthru
      _
    %s79 = sadd.s32 0, 0
    %s80 = smul.u32 2, %s79
    %p81 = scmp.eq.s32.totalorder 0, 0
    // Predicated region
    $region42: #{tpu_custom_call.1} parent=1 // pred_check
      %p82 = pneg %p81
    $region43: #{tpu_custom_call.1} parent=1 // pred_check_branch
      %84 = sbr.rel (%p82) target = $region45
    $region44: #{tpu_custom_call.1} parent=1 // pred_region
      %vm85 = vcmask 0
      %86 = vst.msk [vmem:[#allocation2] sm:$0x1] %vm85, -1e+30
      %87 = vst.msk [vmem:[#allocation3] sm:$0x1] %vm85, 0.0
      %v88 = vlaneseq
      %vm89 = vcmp.ge.s32.totalorder %v88, 0
      %vm90 = vcmp.lt.s32.totalorder %v88, 512
      %vm91 = vmand %vm89, %vm90
      %92 = vst.msk [vmem:[#allocation4] sm:$0xf] %vm91, 0.0
    $region45: #{tpu_custom_call.1} parent=1 // pred_fallthru
      _
    %v93 = vld [vmem:[#allocation8] sm:$0xff]
    %v94 = vld [vmem:[#allocation8 + $0x8] sm:$0xff]
    %v95 = vld [vmem:[#allocation11] sm:$0xff]
    %v96 = vld [vmem:[#allocation11 + $0x8] sm:$0xff]
    %v97 = vld [vmem:[#allocation11 + $0x10] sm:$0xff]
    %v98 = vld [vmem:[#allocation11 + $0x18] sm:$0xff]
    %v99 = vld [vmem:[#allocation11 + $0x20] sm:$0xff]
    %v100 = vld [vmem:[#allocation11 + $0x28] sm:$0xff]
    %v101 = vld [vmem:[#allocation11 + $0x30] sm:$0xff]
    %v102 = vld [vmem:[#allocation11 + $0x38] sm:$0xff]
    %v103 = vld [vmem:[#allocation11 + $0x40] sm:$0xff]
    %v104 = vld [vmem:[#allocation11 + $0x48] sm:$0xff]
    %v105 = vld [vmem:[#allocation11 + $0x50] sm:$0xff]
    %v106 = vld [vmem:[#allocation11 + $0x58] sm:$0xff]
    %v107 = vld [vmem:[#allocation11 + $0x60] sm:$0xff]
    %v108 = vld [vmem:[#allocation11 + $0x68] sm:$0xff]
    %v109 = vld [vmem:[#allocation11 + $0x70] sm:$0xff]
    %v110 = vld [vmem:[#allocation11 + $0x78] sm:$0xff]
    %v111 = vld [vmem:[#allocation11 + $0x80] sm:$0xff]
    %v112 = vld [vmem:[#allocation11 + $0x88] sm:$0xff]
    %v113 = vld [vmem:[#allocation11 + $0x90] sm:$0xff]
    %v114 = vld [vmem:[#allocation11 + $0x98] sm:$0xff]
    %v115 = vld [vmem:[#allocation11 + $0xa0] sm:$0xff]
    %v116 = vld [vmem:[#allocation11 + $0xa8] sm:$0xff]
    %v117 = vld [vmem:[#allocation11 + $0xb0] sm:$0xff]
    %v118 = vld [vmem:[#allocation11 + $0xb8] sm:$0xff]
    %v119 = vld [vmem:[#allocation11 + $0xc0] sm:$0xff]
    %v120 = vld [vmem:[#allocation11 + $0xc8] sm:$0xff]
    %v121 = vld [vmem:[#allocation11 + $0xd0] sm:$0xff]
    %v122 = vld [vmem:[#allocation11 + $0xd8] sm:$0xff]
    %v123 = vld [vmem:[#allocation11 + $0xe0] sm:$0xff]
    %v124 = vld [vmem:[#allocation11 + $0xe8] sm:$0xff]
    %v125 = vld [vmem:[#allocation11 + $0xf0] sm:$0xff]
    %v126 = vld [vmem:[#allocation11 + $0xf8] sm:$0xff]
    %v127 = vld [vmem:[#allocation11 + $0x100] sm:$0xff]
    %v128 = vld [vmem:[#allocation11 + $0x108] sm:$0xff]
    %v129 = vld [vmem:[#allocation11 + $0x110] sm:$0xff]
    %v130 = vld [vmem:[#allocation11 + $0x118] sm:$0xff]
    %v131 = vld [vmem:[#allocation11 + $0x120] sm:$0xff]
    %v132 = vld [vmem:[#allocation11 + $0x128] sm:$0xff]
    %v133 = vld [vmem:[#allocation11 + $0x130] sm:$0xff]
    %v134 = vld [vmem:[#allocation11 + $0x138] sm:$0xff]
    %v135 = vld [vmem:[#allocation11 + $0x140] sm:$0xff]
    %v136 = vld [vmem:[#allocation11 + $0x148] sm:$0xff]
    %v137 = vld [vmem:[#allocation11 + $0x150] sm:$0xff]
    %v138 = vld [vmem:[#allocation11 + $0x158] sm:$0xff]
    %v139 = vld [vmem:[#allocation11 + $0x160] sm:$0xff]
    %v140 = vld [vmem:[#allocation11 + $0x168] sm:$0xff]
    %v141 = vld [vmem:[#allocation11 + $0x170] sm:$0xff]
    %v142 = vld [vmem:[#allocation11 + $0x178] sm:$0xff]
    %v143 = vld [vmem:[#allocation11 + $0x180] sm:$0xff]
    %v144 = vld [vmem:[#allocation11 + $0x188] sm:$0xff]
    %v145 = vld [vmem:[#allocation11 + $0x190] sm:$0xff]
    %v146 = vld [vmem:[#allocation11 + $0x198] sm:$0xff]
    %v147 = vld [vmem:[#allocation11 + $0x1a0] sm:$0xff]
    %v148 = vld [vmem:[#allocation11 + $0x1a8] sm:$0xff]
    %v149 = vld [vmem:[#allocation11 + $0x1b0] sm:$0xff]
    %v150 = vld [vmem:[#allocation11 + $0x1b8] sm:$0xff]
    %v151 = vld [vmem:[#allocation11 + $0x1c0] sm:$0xff]
    %v152 = vld [vmem:[#allocation11 + $0x1c8] sm:$0xff]
    %v153 = vld [vmem:[#allocation11 + $0x1d0] sm:$0xff]
    %v154 = vld [vmem:[#allocation11 + $0x1d8] sm:$0xff]
    %v155 = vld [vmem:[#allocation11 + $0x1e0] sm:$0xff]
    %v156 = vld [vmem:[#allocation11 + $0x1e8] sm:$0xff]
    %v157 = vld [vmem:[#allocation11 + $0x1f0] sm:$0xff]
    %v158 = vld [vmem:[#allocation11 + $0x1f8] sm:$0xff]
    %v159 = vld [vmem:[%s3] sm:$0xf]
    %v161 = vlaneseq
    %v162 = vshrl.u32 %v161, 7
    %v163 = vsub.s32 0, %v162
    %v164 = vrot.slane %v159, %v163
    %v165 = vlaneseq
    %v166 = vshrl.u32 %v165, 7
    %v167 = vsub.s32 1, %v166
    %v168 = vrot.slane %v159, %v167
    %v169 = vlaneseq
    %v170 = vshrl.u32 %v169, 7
    %v171 = vsub.s32 2, %v170
    %v172 = vrot.slane %v159, %v171
    %v173 = vlaneseq
    %v174 = vshrl.u32 %v173, 7
    %v175 = vsub.s32 3, %v174
    %v176 = vrot.slane %v159, %v175
    %181 = vmatprep.subr.mxu0 %v96
    %182 = vmatpush1.msra.mxu0 %v95
    %183 = vmatprep.subr.mxu0 %v100
    %184 = vmatpush1.msra.mxu0 %v99
    %185 = vmatprep.subr.mxu0 %v104
    %186 = vmatpush1.msra.mxu0 %v103
    %187 = vmatprep.subr.mxu0 %v108
    %188 = vmatpush1.msra.mxu0 %v107
    %189 = vmatprep.subr.mxu0 %v112
    %190 = vmatpush1.msra.mxu0 %v111
    %191 = vmatprep.subr.mxu0 %v116
    %192 = vmatpush1.msra.mxu0 %v115
    %193 = vmatprep.subr.mxu0 %v120
    %194 = vmatpush1.msra.mxu0 %v119
    %195 = vmatprep.subr.mxu0 %v124
    %196 = vmatpush1.msra.mxu0 %v123
    %197 = vmatprep.subr.mxu0 %v128
    %198 = vmatpush1.msra.mxu0 %v127
    %199 = vmatprep.subr.mxu0 %v132
    %200 = vmatpush1.msra.mxu0 %v131
    %201 = vmatprep.subr.mxu0 %v136
    %202 = vmatpush1.msra.mxu0 %v135
    %203 = vmatprep.subr.mxu0 %v140
    %204 = vmatpush1.msra.mxu0 %v139
    %205 = vmatprep.subr.mxu0 %v144
    %206 = vmatpush1.msra.mxu0 %v143
    %207 = vmatprep.subr.mxu0 %v148
    %208 = vmatpush1.msra.mxu0 %v147
    %209 = vmatprep.subr.mxu0 %v152
    %210 = vmatpush1.msra.mxu0 %v151
    %211 = vmatprep.subr.mxu0 %v156
    %212 = vmatpush1.msra.mxu0 %v155
    %213 = vmatprep.subr.mxu0 0.0
    %214 = vmatpush1.msra.mxu0 0.0
    %215 = vmatprep.subr.mxu0 0.0
    %216 = vmatpush1.msra.mxu0 0.0
    %217 = vmatprep.subr.mxu0 0.0
    %218 = vmatpush1.msra.mxu0 0.0
    %219 = vmatprep.subr.mxu0 0.0
    %220 = vmatpush1.msra.mxu0 0.0
    %221 = vmatprep.subr.mxu0 0.0
    %222 = vmatpush1.msra.mxu0 0.0
    %223 = vmatprep.subr.mxu0 0.0
    %224 = vmatpush1.msra.mxu0 0.0
    %225 = vmatprep.subr.mxu0 0.0
    %226 = vmatpush1.msra.mxu0 0.0
    %227 = vmatprep.subr.mxu0 0.0
    %228 = vmatpush1.msra.mxu0 0.0
    %229 = vmatprep.subr.mxu0 0.0
    %230 = vmatpush1.msra.mxu0 0.0
    %231 = vmatprep.subr.mxu0 0.0
    %232 = vmatpush1.msra.mxu0 0.0
    %233 = vmatprep.subr.mxu0 0.0
    %234 = vmatpush1.msra.mxu0 0.0
    %235 = vmatprep.subr.mxu0 0.0
    %236 = vmatpush1.msra.mxu0 0.0
    %237 = vmatprep.subr.mxu0 0.0
    %238 = vmatpush1.msra.mxu0 0.0
    %239 = vmatprep.subr.mxu0 0.0
    %240 = vmatpush1.msra.mxu0 0.0
    %241 = vmatprep.subr.mxu0 0.0
    %242 = vmatpush1.msra.mxu0 0.0
    %243 = vmatprep.subr.mxu0 0.0
    %244 = vmatpush1.msra.mxu0 0.0
    %245 = vmatprep.mubr.f32.mxu0 0.0
    %246 = vmatmul.mubr.f32.gmra.mrb[0].mxu0 %v93
    %v247 = vpop.f32.mrb[0].mxu0
    %v248 = vadd.f32 %v164, %v247
    %v249 = vpop.f32.mrb[0].mxu0
    %v250 = vadd.f32 %v168, %v249
    %251 = vmatprep.mubr.f32.mxu0 0.0
    %252 = vmatmul.mubr.f32.gmra.mrb[0].mxu0 %v94
    %v253 = vpop.f32.mrb[0].mxu0
    %v254 = vadd.f32 %v164, %v253
    %v255 = vpop.f32.mrb[0].mxu0
    %v256 = vadd.f32 %v168, %v255
    %257 = vdwg.mxu0
    %258 = vmatprep.subr.mxu0 %v98
    %259 = vmatpush1.msra.mxu0 %v97
    %260 = vmatprep.subr.mxu0 %v102
    %261 = vmatpush1.msra.mxu0 %v101
    %262 = vmatprep.subr.mxu0 %v106
    %263 = vmatpush1.msra.mxu0 %v105
    %264 = vmatprep.subr.mxu0 %v110
    %265 = vmatpush1.msra.mxu0 %v109
    %266 = vmatprep.subr.mxu0 %v114
    %267 = vmatpush1.msra.mxu0 %v113
    %268 = vmatprep.subr.mxu0 %v118
    %269 = vmatpush1.msra.mxu0 %v117
    %270 = vmatprep.subr.mxu0 %v122
    %271 = vmatpush1.msra.mxu0 %v121
    %272 = vmatprep.subr.mxu0 %v126
    %273 = vmatpush1.msra.mxu0 %v125
    %274 = vmatprep.subr.mxu0 %v130
    %275 = vmatpush1.msra.mxu0 %v129
    %276 = vmatprep.subr.mxu0 %v134
    %277 = vmatpush1.msra.mxu0 %v133
    %278 = vmatprep.subr.mxu0 %v138
    %279 = vmatpush1.msra.mxu0 %v137
    %280 = vmatprep.subr.mxu0 %v142
    %281 = vmatpush1.msra.mxu0 %v141
    %282 = vmatprep.subr.mxu0 %v146
    %283 = vmatpush1.msra.mxu0 %v145
    %284 = vmatprep.subr.mxu0 %v150
    %285 = vmatpush1.msra.mxu0 %v149
    %286 = vmatprep.subr.mxu0 %v154
    %287 = vmatpush1.msra.mxu0 %v153
    %288 = vmatprep.subr.mxu0 %v158
    %289 = vmatpush1.msra.mxu0 %v157
    %290 = vmatprep.subr.mxu0 0.0
    %291 = vmatpush1.msra.mxu0 0.0
    %292 = vmatprep.subr.mxu0 0.0
    %293 = vmatpush1.msra.mxu0 0.0
    %294 = vmatprep.subr.mxu0 0.0
    %295 = vmatpush1.msra.mxu0 0.0
    %296 = vmatprep.subr.mxu0 0.0
    %297 = vmatpush1.msra.mxu0 0.0
    %298 = vmatprep.subr.mxu0 0.0
    %299 = vmatpush1.msra.mxu0 0.0
    %300 = vmatprep.subr.mxu0 0.0
    %301 = vmatpush1.msra.mxu0 0.0
    %302 = vmatprep.subr.mxu0 0.0
    %303 = vmatpush1.msra.mxu0 0.0
    %304 = vmatprep.subr.mxu0 0.0
    %305 = vmatpush1.msra.mxu0 0.0
    %306 = vmatprep.subr.mxu0 0.0
    %307 = vmatpush1.msra.mxu0 0.0
    %308 = vmatprep.subr.mxu0 0.0
    %309 = vmatpush1.msra.mxu0 0.0
    %310 = vmatprep.subr.mxu0 0.0
    %311 = vmatpush1.msra.mxu0 0.0
    %312 = vmatprep.subr.mxu0 0.0
    %313 = vmatpush1.msra.mxu0 0.0
    %314 = vmatprep.subr.mxu0 0.0
    %315 = vmatpush1.msra.mxu0 0.0
    %316 = vmatprep.subr.mxu0 0.0
    %317 = vmatpush1.msra.mxu0 0.0
    %318 = vmatprep.subr.mxu0 0.0
    %319 = vmatpush1.msra.mxu0 0.0
    %320 = vmatprep.subr.mxu0 0.0
    %321 = vmatpush1.msra.mxu0 0.0
    %322 = vmatprep.mubr.f32.mxu0 0.0
    %323 = vmatmul.mubr.f32.gmra.mrb[0].mxu0 %v93
    %v324 = vpop.f32.mrb[0].mxu0
    %v325 = vadd.f32 %v172, %v324
    %v326 = vpop.f32.mrb[0].mxu0
    %v327 = vadd.f32 %v176, %v326
    %328 = vmatprep.mubr.f32.mxu0 0.0
    %329 = vmatmul.mubr.f32.gmra.mrb[0].mxu0 %v94
    %v330 = vpop.f32.mrb[0].mxu0
    %v331 = vadd.f32 %v172, %v330
    %v332 = vpop.f32.mrb[0].mxu0
    %v333 = vadd.f32 %v176, %v332
    %334 = vdwg.mxu0
    %v335 = vmul.f32 %v248, 0.5
    %v336 = vmul.f32 %v250, 0.5
    %v337 = vmul.f32 %v325, 0.5
    %v338 = vmul.f32 %v327, 0.5
    %v339 = vmul.f32 %v254, 0.5
    %v340 = vmul.f32 %v256, 0.5
    %v341 = vmul.f32 %v331, 0.5
    %v342 = vmul.f32 %v333, 0.5
    %v343 = vmul.f32 %v248, 0.70710677
    %v344 = vmul.f32 %v250, 0.70710677
    %v345 = vmul.f32 %v325, 0.70710677
    %v346 = vmul.f32 %v327, 0.70710677
    %v347 = vmul.f32 %v254, 0.70710677
    %v348 = vmul.f32 %v256, 0.70710677
    %v349 = vmul.f32 %v331, 0.70710677
    %v350 = vmul.f32 %v333, 0.70710677
    %v351 = vand.u32 2147483647, %v343
    %v352 = vand.u32 2147483647, %v344
    %v353 = vand.u32 2147483647, %v345
    %v354 = vand.u32 2147483647, %v346
    %v355 = vand.u32 2147483647, %v347
    %v356 = vand.u32 2147483647, %v348
    %v357 = vand.u32 2147483647, %v349
    %v358 = vand.u32 2147483647, %v350
    %v359 = vmul.f32 %v351, 0.3275911
    %v360 = vmul.f32 %v352, 0.3275911
    %v361 = vmul.f32 %v353, 0.3275911
    %v362 = vmul.f32 %v354, 0.3275911
    %v363 = vmul.f32 %v355, 0.3275911
    %v364 = vmul.f32 %v356, 0.3275911
    %v365 = vmul.f32 %v357, 0.3275911
    %v366 = vmul.f32 %v358, 0.3275911
    %v367 = vadd.f32 %v359, 1.0
    %v368 = vadd.f32 %v360, 1.0
    %v369 = vadd.f32 %v361, 1.0
    %v370 = vadd.f32 %v362, 1.0
    %v371 = vadd.f32 %v363, 1.0
    %v372 = vadd.f32 %v364, 1.0
    %v373 = vadd.f32 %v365, 1.0
    %v374 = vadd.f32 %v366, 1.0
    %v375 = vrcp.pop %v367
    %v376 = vmul.f32 1.0, %v375
    %v377 = vrcp.pop %v368
    %v378 = vmul.f32 1.0, %v377
    %v379 = vrcp.pop %v369
    %v380 = vmul.f32 1.0, %v379
    %v381 = vrcp.pop %v370
    %v382 = vmul.f32 1.0, %v381
    %v383 = vrcp.pop %v371
    %v384 = vmul.f32 1.0, %v383
    %v385 = vrcp.pop %v372
    %v386 = vmul.f32 1.0, %v385
    %v387 = vrcp.pop %v373
    %v388 = vmul.f32 1.0, %v387
    %v389 = vrcp.pop %v374
    %v390 = vmul.f32 1.0, %v389
    %v391 = vmul.f32 %v376, 1.0614054
    %v392 = vmul.f32 %v378, 1.0614054
    %v393 = vmul.f32 %v380, 1.0614054
    %v394 = vmul.f32 %v382, 1.0614054
    %v395 = vmul.f32 %v384, 1.0614054
    %v396 = vmul.f32 %v386, 1.0614054
    %v397 = vmul.f32 %v388, 1.0614054
    %v398 = vmul.f32 %v390, 1.0614054
    %v399 = vadd.f32 %v391, -1.4531521
    %v400 = vadd.f32 %v392, -1.4531521
    %v401 = vadd.f32 %v393, -1.4531521
    %v402 = vadd.f32 %v394, -1.4531521
    %v403 = vadd.f32 %v395, -1.4531521
    %v404 = vadd.f32 %v396, -1.4531521
    %v405 = vadd.f32 %v397, -1.4531521
    %v406 = vadd.f32 %v398, -1.4531521
    %v407 = vmul.f32 %v399, %v376
    %v408 = vmul.f32 %v400, %v378
    %v409 = vmul.f32 %v401, %v380
    %v410 = vmul.f32 %v402, %v382
    %v411 = vmul.f32 %v403, %v384
    %v412 = vmul.f32 %v404, %v386
    %v413 = vmul.f32 %v405, %v388
    %v414 = vmul.f32 %v406, %v390
    %v415 = vadd.f32 %v407, 1.4214138
    %v416 = vadd.f32 %v408, 1.4214138
    %v417 = vadd.f32 %v409, 1.4214138
    %v418 = vadd.f32 %v410, 1.4214138
    %v419 = vadd.f32 %v411, 1.4214138
    %v420 = vadd.f32 %v412, 1.4214138
    %v421 = vadd.f32 %v413, 1.4214138
    %v422 = vadd.f32 %v414, 1.4214138
    %v423 = vmul.f32 %v415, %v376
    %v424 = vmul.f32 %v416, %v378
    %v425 = vmul.f32 %v417, %v380
    %v426 = vmul.f32 %v418, %v382
    %v427 = vmul.f32 %v419, %v384
    %v428 = vmul.f32 %v420, %v386
    %v429 = vmul.f32 %v421, %v388
    %v430 = vmul.f32 %v422, %v390
    %v431 = vadd.f32 %v423, -0.28449672
    %v432 = vadd.f32 %v424, -0.28449672
    %v433 = vadd.f32 %v425, -0.28449672
    %v434 = vadd.f32 %v426, -0.28449672
    %v435 = vadd.f32 %v427, -0.28449672
    %v436 = vadd.f32 %v428, -0.28449672
    %v437 = vadd.f32 %v429, -0.28449672
    %v438 = vadd.f32 %v430, -0.28449672
    %v439 = vmul.f32 %v431, %v376
    %v440 = vmul.f32 %v432, %v378
    %v441 = vmul.f32 %v433, %v380
    %v442 = vmul.f32 %v434, %v382
    %v443 = vmul.f32 %v435, %v384
    %v444 = vmul.f32 %v436, %v386
    %v445 = vmul.f32 %v437, %v388
    %v446 = vmul.f32 %v438, %v390
    %v447 = vadd.f32 %v439, 0.2548296
    %v448 = vadd.f32 %v440, 0.2548296
    %v449 = vadd.f32 %v441, 0.2548296
    %v450 = vadd.f32 %v442, 0.2548296
    %v451 = vadd.f32 %v443, 0.2548296
    %v452 = vadd.f32 %v444, 0.2548296
    %v453 = vadd.f32 %v445, 0.2548296
    %v454 = vadd.f32 %v446, 0.2548296
    %v455 = vmul.f32 %v447, %v376
    %v456 = vmul.f32 %v448, %v378
    %v457 = vmul.f32 %v449, %v380
    %v458 = vmul.f32 %v450, %v382
    %v459 = vmul.f32 %v451, %v384
    %v460 = vmul.f32 %v452, %v386
    %v461 = vmul.f32 %v453, %v388
    %v462 = vmul.f32 %v454, %v390
    %v463 = vmul.f32 %v351, %v351
    %v464 = vmul.f32 %v352, %v352
    %v465 = vmul.f32 %v353, %v353
    %v466 = vmul.f32 %v354, %v354
    %v467 = vmul.f32 %v355, %v355
    %v468 = vmul.f32 %v356, %v356
    %v469 = vmul.f32 %v357, %v357
    %v470 = vmul.f32 %v358, %v358
    %v471 = vsub.f32 0.0, %v463
    %v472 = vsub.f32 0.0, %v464
    %v473 = vsub.f32 0.0, %v465
    %v474 = vsub.f32 0.0, %v466
    %v475 = vsub.f32 0.0, %v467
    %v476 = vsub.f32 0.0, %v468
    %v477 = vsub.f32 0.0, %v469
    %v478 = vsub.f32 0.0, %v470
    %v479 = vmul.f32 %v471, 1.442695
    %v480 = vpow.pop %v479
    %v481 = vmul.f32 %v472, 1.442695
    %v482 = vpow.pop %v481
    %v483 = vmul.f32 %v473, 1.442695
    %v484 = vpow.pop %v483
    %v485 = vmul.f32 %v474, 1.442695
    %v486 = vpow.pop %v485
    %v487 = vmul.f32 %v475, 1.442695
    %v488 = vpow.pop %v487
    %v489 = vmul.f32 %v476, 1.442695
    %v490 = vpow.pop %v489
    %v491 = vmul.f32 %v477, 1.442695
    %v492 = vpow.pop %v491
    %v493 = vmul.f32 %v478, 1.442695
    %v494 = vpow.pop %v493
    %v495 = vmul.f32 %v455, %v480
    %v496 = vmul.f32 %v456, %v482
    %v497 = vmul.f32 %v457, %v484
    %v498 = vmul.f32 %v458, %v486
    %v499 = vmul.f32 %v459, %v488
    %v500 = vmul.f32 %v460, %v490
    %v501 = vmul.f32 %v461, %v492
    %v502 = vmul.f32 %v462, %v494
    %v503 = vsub.f32 1.0, %v495
    %v504 = vsub.f32 1.0, %v496
    %v505 = vsub.f32 1.0, %v497
    %v506 = vsub.f32 1.0, %v498
    %v507 = vsub.f32 1.0, %v499
    %v508 = vsub.f32 1.0, %v500
    %v509 = vsub.f32 1.0, %v501
    %v510 = vsub.f32 1.0, %v502
    %vm511 = vcmp.lt.f32.partialorder %v343, 0.0
    %vm512 = vcmp.lt.f32.partialorder %v344, 0.0
    %vm513 = vcmp.lt.f32.partialorder %v345, 0.0
    %vm514 = vcmp.lt.f32.partialorder %v346, 0.0
    %vm515 = vcmp.lt.f32.partialorder %v347, 0.0
    %vm516 = vcmp.lt.f32.partialorder %v348, 0.0
    %vm517 = vcmp.lt.f32.partialorder %v349, 0.0
    %vm518 = vcmp.lt.f32.partialorder %v350, 0.0
    %v519 = vsub.f32 0.0, %v503
    %v520 = vsub.f32 0.0, %v504
    %v521 = vsub.f32 0.0, %v505
    %v522 = vsub.f32 0.0, %v506
    %v523 = vsub.f32 0.0, %v507
    %v524 = vsub.f32 0.0, %v508
    %v525 = vsub.f32 0.0, %v509
    %v526 = vsub.f32 0.0, %v510
    %v527 = vsel %vm511, %v519, %v503
    %v528 = vsel %vm512, %v520, %v504
    %v529 = vsel %vm513, %v521, %v505
    %v530 = vsel %vm514, %v522, %v506
    %v531 = vsel %vm515, %v523, %v507
    %v532 = vsel %vm516, %v524, %v508
    %v533 = vsel %vm517, %v525, %v509
    %v534 = vsel %vm518, %v526, %v510
    %v535 = vadd.f32 %v527, 1.0
    %v536 = vadd.f32 %v528, 1.0
    %v537 = vadd.f32 %v529, 1.0
    %v538 = vadd.f32 %v530, 1.0
    %v539 = vadd.f32 %v531, 1.0
    %v540 = vadd.f32 %v532, 1.0
    %v541 = vadd.f32 %v533, 1.0
    %v542 = vadd.f32 %v534, 1.0
    %v543 = vmul.f32 %v335, %v535
    %v544 = vmul.f32 %v336, %v536
    %v545 = vmul.f32 %v337, %v537
    %v546 = vmul.f32 %v338, %v538
    %v547 = vmul.f32 %v339, %v539
    %v548 = vmul.f32 %v340, %v540
    %v549 = vmul.f32 %v341, %v541
    %v550 = vmul.f32 %v342, %v542
    %v551 = vld [vmem:[#allocation13] sm:$0xff]
    %v552 = vld [vmem:[#allocation13 + $0x8] sm:$0xff]
    %v553 = vld [vmem:[#allocation13 + $0x10] sm:$0xff]
    %v554 = vld [vmem:[#allocation13 + $0x18] sm:$0xff]
    %v555 = vld [vmem:[#allocation13 + $0x20] sm:$0xff]
    %v556 = vld [vmem:[#allocation13 + $0x28] sm:$0xff]
    %v557 = vld [vmem:[#allocation13 + $0x30] sm:$0xff]
    %v558 = vld [vmem:[#allocation13 + $0x38] sm:$0xff]
    %v559 = vld [vmem:[#allocation13 + $0x40] sm:$0xff]
    %v560 = vld [vmem:[#allocation13 + $0x48] sm:$0xff]
    %v561 = vld [vmem:[#allocation13 + $0x50] sm:$0xff]
    %v562 = vld [vmem:[#allocation13 + $0x58] sm:$0xff]
    %v563 = vld [vmem:[#allocation13 + $0x60] sm:$0xff]
    %v564 = vld [vmem:[#allocation13 + $0x68] sm:$0xff]
    %v565 = vld [vmem:[#allocation13 + $0x70] sm:$0xff]
    %v566 = vld [vmem:[#allocation13 + $0x78] sm:$0xff]
    %v567 = vld [vmem:[#allocation13 + $0x80] sm:$0xff]
    %v568 = vld [vmem:[#allocation13 + $0x88] sm:$0xff]
    %v569 = vld [vmem:[#allocation13 + $0x90] sm:$0xff]
    %v570 = vld [vmem:[#allocation13 + $0x98] sm:$0xff]
    %v571 = vld [vmem:[#allocation13 + $0xa0] sm:$0xff]
    %v572 = vld [vmem:[#allocation13 + $0xa8] sm:$0xff]
    %v573 = vld [vmem:[#allocation13 + $0xb0] sm:$0xff]
    %v574 = vld [vmem:[#allocation13 + $0xb8] sm:$0xff]
    %v575 = vld [vmem:[#allocation13 + $0xc0] sm:$0xff]
    %v576 = vld [vmem:[#allocation13 + $0xc8] sm:$0xff]
    %v577 = vld [vmem:[#allocation13 + $0xd0] sm:$0xff]
    %v578 = vld [vmem:[#allocation13 + $0xd8] sm:$0xff]
    %v579 = vld [vmem:[#allocation13 + $0xe0] sm:$0xff]
    %v580 = vld [vmem:[#allocation13 + $0xe8] sm:$0xff]
    %v581 = vld [vmem:[#allocation13 + $0xf0] sm:$0xff]
    %v582 = vld [vmem:[#allocation13 + $0xf8] sm:$0xff]
    %v583 = vld [vmem:[#allocation13 + $0x100] sm:$0xff]
    %v584 = vld [vmem:[#allocation13 + $0x108] sm:$0xff]
    %v585 = vld [vmem:[#allocation13 + $0x110] sm:$0xff]
    %v586 = vld [vmem:[#allocation13 + $0x118] sm:$0xff]
    %v587 = vld [vmem:[#allocation13 + $0x120] sm:$0xff]
    %v588 = vld [vmem:[#allocation13 + $0x128] sm:$0xff]
    %v589 = vld [vmem:[#allocation13 + $0x130] sm:$0xff]
    %v590 = vld [vmem:[#allocation13 + $0x138] sm:$0xff]
    %v591 = vld [vmem:[#allocation13 + $0x140] sm:$0xff]
    %v592 = vld [vmem:[#allocation13 + $0x148] sm:$0xff]
    %v593 = vld [vmem:[#allocation13 + $0x150] sm:$0xff]
    %v594 = vld [vmem:[#allocation13 + $0x158] sm:$0xff]
    %v595 = vld [vmem:[#allocation13 + $0x160] sm:$0xff]
    %v596 = vld [vmem:[#allocation13 + $0x168] sm:$0xff]
    %v597 = vld [vmem:[#allocation13 + $0x170] sm:$0xff]
    %v598 = vld [vmem:[#allocation13 + $0x178] sm:$0xff]
    %v599 = vld [vmem:[#allocation13 + $0x180] sm:$0xff]
    %v600 = vld [vmem:[#allocation13 + $0x188] sm:$0xff]
    %v601 = vld [vmem:[#allocation13 + $0x190] sm:$0xff]
    %v602 = vld [vmem:[#allocation13 + $0x198] sm:$0xff]
    %v603 = vld [vmem:[#allocation13 + $0x1a0] sm:$0xff]
    %v604 = vld [vmem:[#allocation13 + $0x1a8] sm:$0xff]
    %v605 = vld [vmem:[#allocation13 + $0x1b0] sm:$0xff]
    %v606 = vld [vmem:[#allocation13 + $0x1b8] sm:$0xff]
    %v607 = vld [vmem:[#allocation13 + $0x1c0] sm:$0xff]
    %v608 = vld [vmem:[#allocation13 + $0x1c8] sm:$0xff]
    %v609 = vld [vmem:[#allocation13 + $0x1d0] sm:$0xff]
    %v610 = vld [vmem:[#allocation13 + $0x1d8] sm:$0xff]
    %v611 = vld [vmem:[#allocation13 + $0x1e0] sm:$0xff]
    %v612 = vld [vmem:[#allocation13 + $0x1e8] sm:$0xff]
    %v613 = vld [vmem:[#allocation13 + $0x1f0] sm:$0xff]
    %v614 = vld [vmem:[#allocation13 + $0x1f8] sm:$0xff]
    %v615 = vld [vmem:[%s5] sm:$0x1]
    %v617 = vlaneseq
    %v618 = vshrl.u32 %v617, 7
    %v619 = vsub.s32 0, %v618
    %v620 = vrot.slane %v615, %v619
    %622 = vmatprep.subr.mxu0 0.0
    %623 = vmatpush1.msra.mxu0 %v551
    %624 = vmatprep.subr.mxu0 0.0
    %625 = vmatpush1.msra.mxu0 %v552
    %626 = vmatprep.subr.mxu0 0.0
    %627 = vmatpush1.msra.mxu0 %v553
    %628 = vmatprep.subr.mxu0 0.0
    %629 = vmatpush1.msra.mxu0 %v554
    %630 = vmatprep.subr.mxu0 0.0
    %631 = vmatpush1.msra.mxu0 %v555
    %632 = vmatprep.subr.mxu0 0.0
    %633 = vmatpush1.msra.mxu0 %v556
    %634 = vmatprep.subr.mxu0 0.0
    %635 = vmatpush1.msra.mxu0 %v557
    %636 = vmatprep.subr.mxu0 0.0
    %637 = vmatpush1.msra.mxu0 %v558
    %638 = vmatprep.subr.mxu0 0.0
    %639 = vmatpush1.msra.mxu0 %v559
    %640 = vmatprep.subr.mxu0 0.0
    %641 = vmatpush1.msra.mxu0 %v560
    %642 = vmatprep.subr.mxu0 0.0
    %643 = vmatpush1.msra.mxu0 %v561
    %644 = vmatprep.subr.mxu0 0.0
    %645 = vmatpush1.msra.mxu0 %v562
    %646 = vmatprep.subr.mxu0 0.0
    %647 = vmatpush1.msra.mxu0 %v563
    %648 = vmatprep.subr.mxu0 0.0
    %649 = vmatpush1.msra.mxu0 %v564
    %650 = vmatprep.subr.mxu0 0.0
    %651 = vmatpush1.msra.mxu0 %v565
    %652 = vmatprep.subr.mxu0 0.0
    %653 = vmatpush1.msra.mxu0 %v566
    %654 = vmatprep.subr.mxu0 0.0
    %655 = vmatpush1.msra.mxu0 %v567
    %656 = vmatprep.subr.mxu0 0.0
    %657 = vmatpush1.msra.mxu0 %v568
    %658 = vmatprep.subr.mxu0 0.0
    %659 = vmatpush1.msra.mxu0 %v569
    %660 = vmatprep.subr.mxu0 0.0
    %661 = vmatpush1.msra.mxu0 %v570
    %662 = vmatprep.subr.mxu0 0.0
    %663 = vmatpush1.msra.mxu0 %v571
    %664 = vmatprep.subr.mxu0 0.0
    %665 = vmatpush1.msra.mxu0 %v572
    %666 = vmatprep.subr.mxu0 0.0
    %667 = vmatpush1.msra.mxu0 %v573
    %668 = vmatprep.subr.mxu0 0.0
    %669 = vmatpush1.msra.mxu0 %v574
    %670 = vmatprep.subr.mxu0 0.0
    %671 = vmatpush1.msra.mxu0 %v575
    %672 = vmatprep.subr.mxu0 0.0
    %673 = vmatpush1.msra.mxu0 %v576
    %674 = vmatprep.subr.mxu0 0.0
    %675 = vmatpush1.msra.mxu0 %v577
    %676 = vmatprep.subr.mxu0 0.0
    %677 = vmatpush1.msra.mxu0 %v578
    %678 = vmatprep.subr.mxu0 0.0
    %679 = vmatpush1.msra.mxu0 %v579
    %680 = vmatprep.subr.mxu0 0.0
    %681 = vmatpush1.msra.mxu0 %v580
    %682 = vmatprep.subr.mxu0 0.0
    %683 = vmatpush1.msra.mxu0 %v581
    %684 = vmatprep.subr.mxu0 0.0
    %685 = vmatpush1.msra.mxu0 %v582
    %686 = vmatprep.mubr.f32.mxu0 %v544
    %687 = vmatmul.mubr.f32.gmra.mrb[0].mxu0 %v543
    %v688 = vpop.f32.mrb[0].mxu0
    %v689 = vadd.f32 %v620, %v688
    %v690 = vpop.f32.mrb[0].mxu0
    %691 = vmatprep.mubr.f32.mxu0 %v548
    %692 = vmatmul.mubr.f32.gmra.mrb[0].mxu0 %v547
    %v693 = vpop.f32.mrb[0].mxu0
    %v694 = vadd.f32 %v620, %v693
    %v695 = vpop.f32.mrb[0].mxu0
    %696 = vdwg.mxu0
    %697 = vmatprep.subr.mxu0 0.0
    %698 = vmatpush1.msra.mxu0 %v583
    %699 = vmatprep.subr.mxu0 0.0
    %700 = vmatpush1.msra.mxu0 %v584
    %701 = vmatprep.subr.mxu0 0.0
    %702 = vmatpush1.msra.mxu0 %v585
    %703 = vmatprep.subr.mxu0 0.0
    %704 = vmatpush1.msra.mxu0 %v586
    %705 = vmatprep.subr.mxu0 0.0
    %706 = vmatpush1.msra.mxu0 %v587
    %707 = vmatprep.subr.mxu0 0.0
    %708 = vmatpush1.msra.mxu0 %v588
    %709 = vmatprep.subr.mxu0 0.0
    %710 = vmatpush1.msra.mxu0 %v589
    %711 = vmatprep.subr.mxu0 0.0
    %712 = vmatpush1.msra.mxu0 %v590
    %713 = vmatprep.subr.mxu0 0.0
    %714 = vmatpush1.msra.mxu0 %v591
    %715 = vmatprep.subr.mxu0 0.0
    %716 = vmatpush1.msra.mxu0 %v592
    %717 = vmatprep.subr.mxu0 0.0
    %718 = vmatpush1.msra.mxu0 %v593
    %719 = vmatprep.subr.mxu0 0.0
    %720 = vmatpush1.msra.mxu0 %v594
    %721 = vmatprep.subr.mxu0 0.0
    %722 = vmatpush1.msra.mxu0 %v595
    %723 = vmatprep.subr.mxu0 0.0
    %724 = vmatpush1.msra.mxu0 %v596
    %725 = vmatprep.subr.mxu0 0.0
    %726 = vmatpush1.msra.mxu0 %v597
    %727 = vmatprep.subr.mxu0 0.0
    %728 = vmatpush1.msra.mxu0 %v598
    %729 = vmatprep.subr.mxu0 0.0
    %730 = vmatpush1.msra.mxu0 %v599
    %731 = vmatprep.subr.mxu0 0.0
    %732 = vmatpush1.msra.mxu0 %v600
    %733 = vmatprep.subr.mxu0 0.0
    %734 = vmatpush1.msra.mxu0 %v601
    %735 = vmatprep.subr.mxu0 0.0
    %736 = vmatpush1.msra.mxu0 %v602
    %737 = vmatprep.subr.mxu0 0.0
    %738 = vmatpush1.msra.mxu0 %v603
    %739 = vmatprep.subr.mxu0 0.0
    %740 = vmatpush1.msra.mxu0 %v604
    %741 = vmatprep.subr.mxu0 0.0
    %742 = vmatpush1.msra.mxu0 %v605
    %743 = vmatprep.subr.mxu0 0.0
    %744 = vmatpush1.msra.mxu0 %v606
    %745 = vmatprep.subr.mxu0 0.0
    %746 = vmatpush1.msra.mxu0 %v607
    %747 = vmatprep.subr.mxu0 0.0
    %748 = vmatpush1.msra.mxu0 %v608
    %749 = vmatprep.subr.mxu0 0.0
    %750 = vmatpush1.msra.mxu0 %v609
    %751 = vmatprep.subr.mxu0 0.0
    %752 = vmatpush1.msra.mxu0 %v610
    %753 = vmatprep.subr.mxu0 0.0
    %754 = vmatpush1.msra.mxu0 %v611
    %755 = vmatprep.subr.mxu0 0.0
    %756 = vmatpush1.msra.mxu0 %v612
    %757 = vmatprep.subr.mxu0 0.0
    %758 = vmatpush1.msra.mxu0 %v613
    %759 = vmatprep.subr.mxu0 0.0
    %760 = vmatpush1.msra.mxu0 %v614
    %761 = vmatprep.mubr.f32.mxu0 %v546
    %762 = vmatmul.mubr.f32.gmra.mrb[0].mxu0 %v545
    %v763 = vpop.f32.mrb[0].mxu0
    %v764 = vadd.f32 %v689, %v763
    %v765 = vpop.f32.mrb[0].mxu0
    %766 = vmatprep.mubr.f32.mxu0 %v550
    %767 = vmatmul.mubr.f32.gmra.mrb[0].mxu0 %v549
    %v768 = vpop.f32.mrb[0].mxu0
    %v769 = vadd.f32 %v694, %v768
    %v770 = vpop.f32.mrb[0].mxu0
    %771 = vdwg.mxu0
    %v772 = vtanh.pop %v764
    %v773 = vtanh.pop %v769
    %v774 = vld [vmem:[%s6] sm:$0x1]
    %s775 = sld [smem:[#allocation7]]
    %v776 = vstv %s775
    %777 = vmatprep.subr.mxu0 0.0
    %778 = vmatpush1.xpose.msra.mxu0 %v772
    %779 = vmatprep.subr.mxu0 0.0
    %780 = vmatpush1.xpose.msra.mxu0 %v773
    %781 = vmatprep.subr.mxu0 0.0
    %782 = vmatpush1.xpose.msra.mxu0 0.0
    %783 = vmatprep.subr.mxu0 0.0
    %784 = vmatpush1.xpose.msra.mxu0 0.0
    %785 = vmatprep.subr.mxu0 0.0
    %786 = vmatpush1.xpose.msra.mxu0 0.0
    %787 = vmatprep.subr.mxu0 0.0
    %788 = vmatpush1.xpose.msra.mxu0 0.0
    %789 = vmatprep.subr.mxu0 0.0
    %790 = vmatpush1.xpose.msra.mxu0 0.0
    %791 = vmatprep.subr.mxu0 0.0
    %792 = vmatpush1.xpose.msra.mxu0 0.0
    %793 = vmatprep.subr.mxu0 0.0
    %794 = vmatpush1.xpose.msra.mxu0 0.0
    %795 = vmatprep.subr.mxu0 0.0
    %796 = vmatpush1.xpose.msra.mxu0 0.0
    %797 = vmatprep.subr.mxu0 0.0
    %798 = vmatpush1.xpose.msra.mxu0 0.0
    %799 = vmatprep.subr.mxu0 0.0
    %800 = vmatpush1.xpose.msra.mxu0 0.0
    %801 = vmatprep.subr.mxu0 0.0
    %802 = vmatpush1.xpose.msra.mxu0 0.0
    %803 = vmatprep.subr.mxu0 0.0
    %804 = vmatpush1.xpose.msra.mxu0 0.0
    %805 = vmatprep.subr.mxu0 0.0
    %806 = vmatpush1.xpose.msra.mxu0 0.0
    %807 = vmatprep.subr.mxu0 0.0
    %808 = vmatpush1.xpose.msra.mxu0 0.0
    %809 = vmatprep.subr.mxu0 0.0
    %810 = vmatpush1.xpose.msra.mxu0 0.0
    %811 = vmatprep.subr.mxu0 0.0
    %812 = vmatpush1.xpose.msra.mxu0 0.0
    %813 = vmatprep.subr.mxu0 0.0
    %814 = vmatpush1.xpose.msra.mxu0 0.0
    %815 = vmatprep.subr.mxu0 0.0
    %816 = vmatpush1.xpose.msra.mxu0 0.0
    %817 = vmatprep.subr.mxu0 0.0
    %818 = vmatpush1.xpose.msra.mxu0 0.0
    %819 = vmatprep.subr.mxu0 0.0
    %820 = vmatpush1.xpose.msra.mxu0 0.0
    %821 = vmatprep.subr.mxu0 0.0
    %822 = vmatpush1.xpose.msra.mxu0 0.0
    %823 = vmatprep.subr.mxu0 0.0
    %824 = vmatpush1.xpose.msra.mxu0 0.0
    %825 = vmatprep.subr.mxu0 0.0
    %826 = vmatpush1.xpose.msra.mxu0 0.0
    %827 = vmatprep.subr.mxu0 0.0
    %828 = vmatpush1.xpose.msra.mxu0 0.0
    %829 = vmatprep.subr.mxu0 0.0
    %830 = vmatpush1.xpose.msra.mxu0 0.0
    %831 = vmatprep.subr.mxu0 0.0
    %832 = vmatpush1.xpose.msra.mxu0 0.0
    %833 = vmatprep.subr.mxu0 0.0
    %834 = vmatpush1.xpose.msra.mxu0 0.0
    %835 = vmatprep.subr.mxu0 0.0
    %836 = vmatpush1.xpose.msra.mxu0 0.0
    %837 = vmatprep.subr.mxu0 0.0
    %838 = vmatpush1.xpose.msra.mxu0 0.0
    %839 = vmatprep.subr.mxu0 0.0
    %840 = vmatpush1.xpose.msra.mxu0 0.0
    %841 = vmatprep.mubr.f32.mxu0 0.0
    %842 = vmatmul.mubr.f32.gmra.mrb[0].mxu0 %v774
    %v843 = vpop.f32.mrb[0].mxu0
    %v844 = vadd.f32 %v776, %v843
    %v845 = vpop.f32.mrb[0].mxu0
    %846 = vdwg.mxu0
    %s847 = sadd.s32 0, 0
    %s848 = smul.u32 %s847, 16
    %v849 = vlaneseq
    %v850 = vand.u32 %v849, 127
    %v851 = vstv %s848
    %v852 = vadd.s32 %v851, %v850
    %s853 = sld [smem:[#allocation6]]
    %v854 = vstv %s853
    %vm855 = vcmp.lt.s32.totalorder %v852, %v854
    %v856 = vsel %vm855, %v844, -1e+30
    %v857 = vld [vmem:[#allocation2] sm:$0x1]
    %vm858 = vcmask 122880
    %v859 = vsel %vm858, %v856, -inf
    %860 = vmax.xlane.f32.xlu0 %v859
    %v861 = vpop.xlane.xlu0 %860
    %v862 = vmax.f32 %v857, %v861
    %v863 = vsub.f32 %v857, %v862
    %v864 = vmul.f32 %v863, 1.442695
    %v865 = vpow.pop %v864
    %867 = vset.pattern.permute.xlu0 0
    %868 = vperm.xlu0 %867, %v862
    %v869 = vpop.permute.xlu0 %868
    %v871 = vlaneseq
    %v872 = vshrl.u32 %v871, 7
    %v873 = vsub.s32 0, %v872
    %v874 = vrot.slane %v869, %v873
    %v875 = vsub.f32 %v856, %v874
    %v876 = vmul.f32 %v875, 1.442695
    %v877 = vpow.pop %v876
    %v878 = vld [vmem:[#allocation3] sm:$0x1]
    %v879 = vmul.f32 %v865, %v878
    %v880 = vsel %vm858, %v877, 0.0
    %881 = vadd.xlane.f32.xlu0 %v880
    %v882 = vpop.xlane.xlu0 %881
    %v883 = vadd.f32 %v879, %v882
    %vm884 = vcmask 0
    %885 = vst.msk [vmem:[#allocation3] sm:$0x1] %vm884, %v883
    %v886 = vld [vmem:[#allocation4] sm:$0xf]
    %888 = vset.pattern.permute.xlu0 0
    %889 = vperm.xlu0 %888, %v865
    %v890 = vpop.permute.xlu0 %889
    %v892 = vlaneseq
    %v893 = vshrl.u32 %v892, 7
    %v894 = vsub.s32 0, %v893
    %v895 = vrot.slane %v890, %v894
    %v896 = vmul.f32 %v895, %v886
    %vm897 = vcmask 130048
    %v899 = vsel %vm897, %v877, 0
    %901 = vmatprep.subr.mxu0 %v544
    %902 = vmatpush1.msra.mxu0 %v543
    %903 = vmatprep.subr.mxu0 %v548
    %904 = vmatpush1.msra.mxu0 %v547
    %905 = vmatprep.subr.mxu0 0.0
    %906 = vmatpush1.msra.mxu0 0.0
    %907 = vmatprep.subr.mxu0 0.0
    %908 = vmatpush1.msra.mxu0 0.0
    %909 = vmatprep.subr.mxu0 0.0
    %910 = vmatpush1.msra.mxu0 0.0
    %911 = vmatprep.subr.mxu0 0.0
    %912 = vmatpush1.msra.mxu0 0.0
    %913 = vmatprep.subr.mxu0 0.0
    %914 = vmatpush1.msra.mxu0 0.0
    %915 = vmatprep.subr.mxu0 0.0
    %916 = vmatpush1.msra.mxu0 0.0
    %917 = vmatprep.subr.mxu0 0.0
    %918 = vmatpush1.msra.mxu0 0.0
    %919 = vmatprep.subr.mxu0 0.0
    %920 = vmatpush1.msra.mxu0 0.0
    %921 = vmatprep.subr.mxu0 0.0
    %922 = vmatpush1.msra.mxu0 0.0
    %923 = vmatprep.subr.mxu0 0.0
    %924 = vmatpush1.msra.mxu0 0.0
    %925 = vmatprep.subr.mxu0 0.0
    %926 = vmatpush1.msra.mxu0 0.0
    %927 = vmatprep.subr.mxu0 0.0
    %928 = vmatpush1.msra.mxu0 0.0
    %929 = vmatprep.subr.mxu0 0.0
    %930 = vmatpush1.msra.mxu0 0.0
    %931 = vmatprep.subr.mxu0 0.0
    %932 = vmatpush1.msra.mxu0 0.0
    %933 = vmatprep.subr.mxu0 0.0
    %934 = vmatpush1.msra.mxu0 0.0
    %935 = vmatprep.subr.mxu0 0.0
    %936 = vmatpush1.msra.mxu0 0.0
    %937 = vmatprep.subr.mxu0 0.0
    %938 = vmatpush1.msra.mxu0 0.0
    %939 = vmatprep.subr.mxu0 0.0
    %940 = vmatpush1.msra.mxu0 0.0
    %941 = vmatprep.subr.mxu0 0.0
    %942 = vmatpush1.msra.mxu0 0.0
    %943 = vmatprep.subr.mxu0 0.0
    %944 = vmatpush1.msra.mxu0 0.0
    %945 = vmatprep.subr.mxu0 0.0
    %946 = vmatpush1.msra.mxu0 0.0
    %947 = vmatprep.subr.mxu0 0.0
    %948 = vmatpush1.msra.mxu0 0.0
    %949 = vmatprep.subr.mxu0 0.0
    %950 = vmatpush1.msra.mxu0 0.0
    %951 = vmatprep.subr.mxu0 0.0
    %952 = vmatpush1.msra.mxu0 0.0
    %953 = vmatprep.subr.mxu0 0.0
    %954 = vmatpush1.msra.mxu0 0.0
    %955 = vmatprep.subr.mxu0 0.0
    %956 = vmatpush1.msra.mxu0 0.0
    %957 = vmatprep.subr.mxu0 0.0
    %958 = vmatpush1.msra.mxu0 0.0
    %959 = vmatprep.subr.mxu0 0.0
    %960 = vmatpush1.msra.mxu0 0.0
    %961 = vmatprep.subr.mxu0 0.0
    %962 = vmatpush1.msra.mxu0 0.0
    %963 = vmatprep.subr.mxu0 0.0
    %964 = vmatpush1.msra.mxu0 0.0
    %965 = vmatprep.mubr.f32.mxu0 0.0
    %966 = vmatmul.mubr.f32.gmra.mrb[0].mxu0 %v899
    %v967 = vpop.f32.mrb[0].mxu0
    %v968 = vadd.f32 0.0, %v967
    %v969 = vpop.f32.mrb[0].mxu0
    %v970 = vadd.f32 0.0, %v969
    %971 = vdwg.mxu0
    %972 = vmatprep.subr.mxu0 %v546
    %973 = vmatpush1.msra.mxu0 %v545
    %974 = vmatprep.subr.mxu0 %v550
    %975 = vmatpush1.msra.mxu0 %v549
    %976 = vmatprep.subr.mxu0 0.0
    %977 = vmatpush1.msra.mxu0 0.0
    %978 = vmatprep.subr.mxu0 0.0
    %979 = vmatpush1.msra.mxu0 0.0
    %980 = vmatprep.subr.mxu0 0.0
    %981 = vmatpush1.msra.mxu0 0.0
    %982 = vmatprep.subr.mxu0 0.0
    %983 = vmatpush1.msra.mxu0 0.0
    %984 = vmatprep.subr.mxu0 0.0
    %985 = vmatpush1.msra.mxu0 0.0
    %986 = vmatprep.subr.mxu0 0.0
    %987 = vmatpush1.msra.mxu0 0.0
    %988 = vmatprep.subr.mxu0 0.0
    %989 = vmatpush1.msra.mxu0 0.0
    %990 = vmatprep.subr.mxu0 0.0
    %991 = vmatpush1.msra.mxu0 0.0
    %992 = vmatprep.subr.mxu0 0.0
    %993 = vmatpush1.msra.mxu0 0.0
    %994 = vmatprep.subr.mxu0 0.0
    %995 = vmatpush1.msra.mxu0 0.0
    %996 = vmatprep.subr.mxu0 0.0
    %997 = vmatpush1.msra.mxu0 0.0
    %998 = vmatprep.subr.mxu0 0.0
    %999 = vmatpush1.msra.mxu0 0.0
    %1000 = vmatprep.subr.mxu0 0.0
    %1001 = vmatpush1.msra.mxu0 0.0
    %1002 = vmatprep.subr.mxu0 0.0
    %1003 = vmatpush1.msra.mxu0 0.0
    %1004 = vmatprep.subr.mxu0 0.0
    %1005 = vmatpush1.msra.mxu0 0.0
    %1006 = vmatprep.subr.mxu0 0.0
    %1007 = vmatpush1.msra.mxu0 0.0
    %1008 = vmatprep.subr.mxu0 0.0
    %1009 = vmatpush1.msra.mxu0 0.0
    %1010 = vmatprep.subr.mxu0 0.0
    %1011 = vmatpush1.msra.mxu0 0.0
    %1012 = vmatprep.subr.mxu0 0.0
    %1013 = vmatpush1.msra.mxu0 0.0
    %1014 = vmatprep.subr.mxu0 0.0
    %1015 = vmatpush1.msra.mxu0 0.0
    %1016 = vmatprep.subr.mxu0 0.0
    %1017 = vmatpush1.msra.mxu0 0.0
    %1018 = vmatprep.subr.mxu0 0.0
    %1019 = vmatpush1.msra.mxu0 0.0
    %1020 = vmatprep.subr.mxu0 0.0
    %1021 = vmatpush1.msra.mxu0 0.0
    %1022 = vmatprep.subr.mxu0 0.0
    %1023 = vmatpush1.msra.mxu0 0.0
    %1024 = vmatprep.subr.mxu0 0.0
    %1025 = vmatpush1.msra.mxu0 0.0
    %1026 = vmatprep.subr.mxu0 0.0
    %1027 = vmatpush1.msra.mxu0 0.0
    %1028 = vmatprep.subr.mxu0 0.0
    %1029 = vmatpush1.msra.mxu0 0.0
    %1030 = vmatprep.subr.mxu0 0.0
    %1031 = vmatpush1.msra.mxu0 0.0
    %1032 = vmatprep.subr.mxu0 0.0
    %1033 = vmatpush1.msra.mxu0 0.0
    %1034 = vmatprep.subr.mxu0 0.0
    %1035 = vmatpush1.msra.mxu0 0.0
    %1036 = vmatprep.mubr.f32.mxu0 0.0
    %1037 = vmatmul.mubr.f32.gmra.mrb[0].mxu0 %v899
    %v1038 = vpop.f32.mrb[0].mxu0
    %v1039 = vadd.f32 0.0, %v1038
    %v1040 = vpop.f32.mrb[0].mxu0
    %v1041 = vadd.f32 0.0, %v1040
    %1042 = vdwg.mxu0
    %v1047 = vcombine.low %v968, %v970
    %v1048 = vcombine.low %v1039, %v1041
    %v1050 = vunpack.c.l.s4 1966171168
    %v1051 = vunpack.c.0.s8 %v1050
    %v1052 = vlaneseq
    %v1053 = vshrl.u32 %v1052, 7
    %v1054 = vsub.s32 %v1051, %v1053
    %v1055 = vrot.slane %v1047, %v1054
    %v1057 = vunpack.c.l.s4 1966171168
    %v1058 = vunpack.c.0.s8 %v1057
    %v1059 = vlaneseq
    %v1060 = vshrl.u32 %v1059, 7
    %v1061 = vsub.s32 %v1058, %v1060
    %v1062 = vrot.slane %v1048, %v1061
    %v1063 = vcombine.low %v1055, %v1062
    %v1065 = vunpack.c.l.s4 1966171168
    %v1066 = vunpack.c.0.s8 %v1065
    %v1067 = vlaneseq
    %v1068 = vshrl.u32 %v1067, 7
    %v1069 = vsub.s32 %v1066, %v1068
    %v1070 = vrot.slane %v1063, %v1069
    %v1072 = vadd.f32 %v896, %v1070
    %v1073 = vlaneseq
    %vm1074 = vcmp.ge.s32.totalorder %v1073, 0
    %vm1075 = vcmp.lt.s32.totalorder %v1073, 512
    %vm1076 = vmand %vm1074, %vm1075
    %1077 = vst.msk [vmem:[#allocation4] sm:$0xf] %vm1076, %v1072
    %1078 = vst.msk [vmem:[#allocation2] sm:$0x1] %vm884, %v862
    // Predicated region
    $region46: #{tpu_custom_call.1} parent=1 // pred_check
      %p1079 = pneg %p81
    $region47: #{tpu_custom_call.1} parent=1 // pred_check_branch
      %1081 = sbr.rel (%p1079) target = $region49
    $region48: #{tpu_custom_call.1} parent=1 // pred_region
      %v1082 = vld [vmem:[#allocation2] sm:$0x1]
      %1083 = vst.msk [vmem:[#allocation14] sm:$0x1] %vm884, %v1082
      %v1084 = vld [vmem:[#allocation3] sm:$0x1]
      %1085 = vst.msk [vmem:[#allocation15] sm:$0x1] %vm884, %v1084
      %v1086 = vld [vmem:[#allocation4] sm:$0xf]
      %1087 = vst.msk [vmem:[#allocation17] sm:$0xf] %vm1076, %v1086
    $region49: #{tpu_custom_call.1} parent=1 // pred_fallthru
      _
    // Predicated region
    $region50: #{tpu_custom_call.1} parent=1 // pred_check
      _
    $region51: #{tpu_custom_call.1} parent=1 // pred_check_branch
      %1089 = sbr.rel (0) target = $region53
    $region52: #{tpu_custom_call.1} parent=1 // pred_region
      %s1091 = ssub.s32 16, 16
      %1092 = vsyncadd [#allocation10], %s1091
      %s1094 = sshll.u32 [#allocation14], 4
      %s1095 = int_to_ptr.vmem [resolvable:$true] %s1094
      %1097 = dma.vmem_to_hbm [thread:$0]  %s1095, 16, %s8, [#allocation10]
    $region53: #{tpu_custom_call.1} parent=1 // pred_fallthru
      _
    // Predicated region
    $region54: #{tpu_custom_call.1} parent=1 // pred_check
      _
    $region55: #{tpu_custom_call.1} parent=1 // pred_check_branch
      %1099 = sbr.rel (0) target = $region57
    $region56: #{tpu_custom_call.1} parent=1 // pred_region
      %s1101 = ssub.s32 16, 16
      %1102 = vsyncadd [#allocation16], %s1101
      %s1104 = sshll.u32 [#allocation15], 4
      %s1105 = int_to_ptr.vmem [resolvable:$true] %s1104
      %1107 = dma.vmem_to_hbm [thread:$0]  %s1105, 16, %s9, [#allocation16]
    $region57: #{tpu_custom_call.1} parent=1 // pred_fallthru
      _
    // Predicated region
    $region58: #{tpu_custom_call.1} parent=1 // pred_check
      _
    $region59: #{tpu_custom_call.1} parent=1 // pred_check_branch
      %1109 = sbr.rel (0) target = $region61
    $region60: #{tpu_custom_call.1} parent=1 // pred_region
      %s1111 = ssub.s32 64, 64
      %1112 = vsyncadd [#allocation16], %s1111
      %s1114 = sshll.u32 [#allocation17], 4
      %s1115 = int_to_ptr.vmem [resolvable:$true] %s1114
      %1117 = dma.vmem_to_hbm [thread:$0]  %s1115, 64, %s10, [#allocation16]
    $region61: #{tpu_custom_call.1} parent=1 // pred_fallthru
      _
    // Predicated region
    $region62: #{tpu_custom_call.1} parent=1 // pred_check
      _
    $region63: #{tpu_custom_call.1} parent=1 // pred_check_branch
      %1119 = sbr.rel (0) target = $region65
    $region64: #{tpu_custom_call.1} parent=1 // pred_region
      %1120 = dma.done [#allocation10], 16
    $region65: #{tpu_custom_call.1} parent=1 // pred_fallthru
      _
    // Predicated region
    $region66: #{tpu_custom_call.1} parent=1 // pred_check
      _
    $region67: #{tpu_custom_call.1} parent=1 // pred_check_branch
      %1122 = sbr.rel (0) target = $region69
    $region68: #{tpu_custom_call.1} parent=1 // pred_region
      %1123 = dma.done [#allocation16], 16
    $region69: #{tpu_custom_call.1} parent=1 // pred_fallthru
      _
    // Predicated region
    $region70: #{tpu_custom_call.1} parent=1 // pred_check
      _
    $region71: #{tpu_custom_call.1} parent=1 // pred_check_branch
      %1125 = sbr.rel (0) target = $region73
    $region72: #{tpu_custom_call.1} parent=1 // pred_region
      %1126 = dma.done [#allocation16], 64
    $region73: #{tpu_custom_call.1} parent=1 // pred_fallthru
      _
    %1127 = vsyncpa [#allocation9], 1
    %1128 = vsyncpa [#allocation12], 1
    %1129 = vsyncpa [#allocation10], 1
    %1130 = vsyncpa [#allocation16], 1

</llo_original>
